<compile_context>
chip_gen: v7x
topology: tpu7x:2x2x1
jax: 0.10.0
libtpu: 0.0.40
codegen_flags: <defaults>
</compile_context>

<pallas_src>
import functools
import math

import jax
import jax.numpy as jnp
from jax import lax
from jax.experimental import pallas as pl
from jax.experimental.pallas import tpu as pltpu


# ----------------------------- Pallas kernel --------------------------------
def _conv_mha_kernel(q_ref, k_ref, v_ref,                 # activations (un-padded)
                     wq_ref, bq_ref, wk_ref, bk_ref,      # head-concatenated conv weights
                     wvh_ref,                             # fused (Wv @ Wh / n_head)
                     out_ref, attn_ref,                   # outputs
                     *, n_head, d_q, kernel_size):
    K = kernel_size
    L = v_ref.shape[1]
    D = v_ref.shape[2]

    # ---- causal K-tap conv, all heads at once (one wide MXU op per input) ----
    # Left-pad in VMEM values (no extra HBM traffic) and build im2col so the
    # conv is a single (L, K*D) @ (K*D, H*d_q) contraction.
    pad = jnp.zeros((K - 1, D), jnp.float32)
    q_pad = jnp.concatenate([pad, q_ref[0].astype(jnp.float32)], axis=0)   # (L+K-1, D)
    k_pad = jnp.concatenate([pad, k_ref[0].astype(jnp.float32)], axis=0)
    q_col = jnp.concatenate([q_pad[j:j + L, :] for j in range(K)], axis=1)  # (L, K*D)
    k_col = jnp.concatenate([k_pad[j:j + L, :] for j in range(K)], axis=1)

    # 1/sqrt(d_k) already folded into wq/bq in the wrapper.
    qs = jnp.dot(q_col, wq_ref[...], preferred_element_type=jnp.float32) + bq_ref[...]
    ks = jnp.dot(k_col, wk_ref[...], preferred_element_type=jnp.float32) + bk_ref[...]

    # ---- fused shared-V projection + head mean + output projection ----------
    # vproj = v @ (Wv @ Wh / H)   (computed once per batch step)
    vproj = jnp.dot(v_ref[0].astype(jnp.float32), wvh_ref[...],
                    preferred_element_type=jnp.float32)                     # (L, D)

    attn_blocks = []
    attn_sum = jnp.zeros((L, L), jnp.float32)
    dn = (((1,), (1,)), ((), ()))      # contract d_q dim of q with d_q dim of k (no .T)
    for h in range(n_head):            # static unroll; n_head is small
        qh = qs[:, h * d_q:(h + 1) * d_q]
        kh = ks[:, h * d_q:(h + 1) * d_q]
        s = lax.dot_general(qh, kh, dn, preferred_element_type=jnp.float32)  # (L, L)
        s = s - jnp.max(s, axis=-1, keepdims=True)
        e = jnp.exp(s)
        attn = e / jnp.sum(e, axis=-1, keepdims=True)   # exact normalization
        attn_blocks.append(attn)
        attn_sum = attn_sum + attn

    # out = (sum_h attn_h) @ vproj  — single PV matmul, wh already fused/scaled.
    out_ref[0] = jnp.dot(attn_sum, vproj,
                         preferred_element_type=jnp.float32).astype(out_ref.dtype)

    # Lane-dense (L, H*L) store; wrapper reshape to (B, L, H, L) is free
    # (trailing-dim split, no transpose / extra HBM pass).
    attn_ref[0] = jnp.concatenate(attn_blocks, axis=1).astype(attn_ref.dtype)


# ------------------------------- wrapper -------------------------------------
def conv_multi_head_attention(q, k, v, params, *, n_head, kernel_size=5):
    """q, k, v: (B, L, d_model). Returns (outputs (B,L,d_model), attn (B,L,n_head,L))."""
    B, L, D = q.shape
    K = kernel_size
    wq, bq, wk, bk, wv_mat, wh_mat = params
    d_q = wq.shape[-1]

    scale = 1.0 / math.sqrt(d_q)
    # Head-concatenated conv weights: column block h*d_q:(h+1)*d_q == head h.
    # Fold 1/sqrt(d_k) into the Q projection.
    wq_cat = jnp.transpose(wq, (1, 0, 2)).reshape(K * D, n_head * d_q) * scale
    bq_cat = bq.reshape(1, n_head * d_q) * scale
    wk_cat = jnp.transpose(wk, (1, 0, 2)).reshape(K * D, n_head * d_q)
    bk_cat = bk.reshape(1, n_head * d_q)
    # Fuse shared V conv, head mean (1/n_head) and output projection into one (D, D).
    w_vh = (wv_mat @ wh_mat) / float(n_head)

    kernel = functools.partial(_conv_mha_kernel, n_head=n_head, d_q=d_q, kernel_size=K)

    out, attn_flat = pl.pallas_call(
        kernel,
        out_shape=(
            jax.ShapeDtypeStruct((B, L, D), q.dtype),
            jax.ShapeDtypeStruct((B, L, n_head * L), jnp.float32),
        ),
        grid_spec=pltpu.PrefetchScalarGridSpec(
            num_scalar_prefetch=0,
            grid=(B,),
            in_specs=[
                pl.BlockSpec((1, L, D), lambda b: (b, 0, 0)),            # q
                pl.BlockSpec((1, L, D), lambda b: (b, 0, 0)),            # k
                pl.BlockSpec((1, L, D), lambda b: (b, 0, 0)),            # v
                pl.BlockSpec((K * D, n_head * d_q), lambda b: (0, 0)),   # Wq (all heads, scaled)
                pl.BlockSpec((1, n_head * d_q), lambda b: (0, 0)),       # bq (scaled)
                pl.BlockSpec((K * D, n_head * d_q), lambda b: (0, 0)),   # Wk (all heads)
                pl.BlockSpec((1, n_head * d_q), lambda b: (0, 0)),       # bk
                pl.BlockSpec((D, D), lambda b: (0, 0)),                  # Wv @ Wh / n_head
            ],
            out_specs=[
                pl.BlockSpec((1, L, D), lambda b: (b, 0, 0)),            # outputs
                pl.BlockSpec((1, L, n_head * L), lambda b: (b, 0, 0)),   # attn (lane-dense)
            ],
        ),
        compiler_params=pltpu.CompilerParams(
            dimension_semantics=("parallel",),
            vmem_limit_bytes=32 * 1024 * 1024),
    )(q, k, v, wq_cat, bq_cat, wk_cat, bk_cat, w_vh)

    # (B, L, H*L) -> (B, L, H, L): layout-preserving split of the last dim.
    attn = attn_flat.reshape(B, L, n_head, L)
    return out, attn


# -------------------------- parameter construction ---------------------------
def make_params(key, n_head, d_model, kernel_size=5):
    """Deterministic xavier-uniform weights, zero biases (as in init_weights)."""
    K = kernel_size
    d_q = d_v = d_model // n_head

    def xavier(key, shape, fan_in, fan_out):
        bound = math.sqrt(6.0 / (fan_in + fan_out))
        return jax.random.uniform(key, shape, jnp.float32, -bound, bound)

    keys = jax.random.split(key, 2 * n_head + 2)

    # Conv1d weight in PyTorch is (out_ch, in_ch, K).  Rearranged to the matmul
    # form used by the kernel: Wmat[j*D + c, o] = W[o, c, j]  -> shape (K*D, d_q)
    def conv_w_to_mat(w):
        return jnp.transpose(w, (2, 1, 0)).reshape(K * d_model, -1)

    wq = jnp.stack([conv_w_to_mat(
        xavier(keys[i], (d_q, d_model, K), d_model * K, d_q * K))
        for i in range(n_head)], 0)                         # (H, K*D, d_q)
    wk = jnp.stack([conv_w_to_mat(
        xavier(keys[n_head + i], (d_q, d_model, K), d_model * K, d_q * K))
        for i in range(n_head)], 0)                         # (H, K*D, d_q)
    bq = jnp.zeros((n_head, d_q), jnp.float32)
    bk = jnp.zeros((n_head, d_q), jnp.float32)

    wv = xavier(keys[-2], (d_v, d_model, 1), d_model, d_v)  # shared 1x1 conv, no bias
    wv_mat = jnp.transpose(wv[:, :, 0], (1, 0))             # (D, d_v)

    wh = xavier(keys[-1], (d_model, d_v), d_v, d_model)     # Linear(d_v, d_model), no bias
    wh_mat = jnp.transpose(wh, (1, 0))                      # (d_v, D)

    return wq, bq, wk, bk, wv_mat, wh_mat


# ------------------------------ pure-JAX reference ---------------------------
def reference(q, k, v, params, *, n_head, kernel_size=5):
    B, L, D = q.shape
    K = kernel_size
    wq, bq, wk, bk, wv_mat, wh_mat = params

    def im2col(x):
        xp = jnp.pad(x, ((0, 0), (K - 1, 0), (0, 0)))
        return jnp.stack([xp[:, j:j + L, :] for j in range(K)], 2).reshape(B, L, K * D)

    q_col, k_col = im2col(q), im2col(k)
    heads, attns = [], []
    for h in range(n_head):
        qs = q_col @ wq[h] + bq[h]
        ks = k_col @ wk[h] + bk[h]
        vs = v @ wv_mat
        scores = jnp.einsum("bqd,bkd->bqk", qs, ks) / jnp.sqrt(jnp.float32(qs.shape[-1]))
        attn = jax.nn.softmax(scores, axis=-1)
        heads.append(jnp.einsum("bqk,bkd->bqd", attn, vs))
        attns.append(attn)
    head = jnp.stack(heads, 2)
    attn = jnp.stack(attns, 2)
    out = jnp.mean(head, 2) @ wh_mat
    return out, attn


# ----------------------------------- main ------------------------------------
if __name__ == "__main__":
    n_head, d_model, L, B = 4, 32, 8, 2

    key = jax.random.PRNGKey(0)
    kq, kk, kv, kp = jax.random.split(key, 4)
    q = jax.random.normal(kq, (B, L, d_model), jnp.float32)
    k = jax.random.normal(kk, (B, L, d_model), jnp.float32)
    v = jax.random.normal(kv, (B, L, d_model), jnp.float32)
    params = make_params(kp, n_head, d_model)

    out, attn = conv_multi_head_attention(q, k, v, params, n_head=n_head)
    out, attn = jax.block_until_ready((out, attn))

    out_ref, attn_ref = reference(q, k, v, params, n_head=n_head)
    assert out.shape == (B, L, d_model) and attn.shape == (B, L, n_head, L)
    assert jnp.allclose(out, out_ref, atol=1e-3, rtol=1e-3)
    assert jnp.allclose(attn, attn_ref, atol=1e-3, rtol=1e-3)

    print("KERNEL_OK")
</pallas_src>

<mosaic_0001>
module attributes {stable_mosaic.version = 11 : i64} {
  func.func @_conv_mha_kernel(%arg0: i32, %arg1: memref<1x8x32xf32, #tpu.memory_space<vmem>>, %arg2: memref<1x8x32xf32, #tpu.memory_space<vmem>>, %arg3: memref<1x8x32xf32, #tpu.memory_space<vmem>>, %arg4: memref<160x32xf32, #tpu.memory_space<vmem>>, %arg5: memref<1x32xf32, #tpu.memory_space<vmem>>, %arg6: memref<160x32xf32, #tpu.memory_space<vmem>>, %arg7: memref<1x32xf32, #tpu.memory_space<vmem>>, %arg8: memref<32x32xf32, #tpu.memory_space<vmem>>, %arg9: memref<1x8x32xf32, #tpu.memory_space<vmem>>, %arg10: memref<1x8x32xf32, #tpu.memory_space<vmem>>) attributes {dimension_semantics = [#tpu.dimension_semantics<parallel>], iteration_bounds = array<i64: 2>, scalar_prefetch = 0 : i64, scratch_operands = 0 : i64, tpu.core_type = #tpu.core_type<tc>, window_params = [{transform_indices = @transform_0, window_bounds = array<i64: 1, 8, 32>}, {transform_indices = @transform_1, window_bounds = array<i64: 1, 8, 32>}, {transform_indices = @transform_2, window_bounds = array<i64: 1, 8, 32>}, {pipeline_mode = #tpu.pipeline_mode<synchronous>, transform_indices = @transform_3, window_bounds = array<i64: 160, 32>}, {pipeline_mode = #tpu.pipeline_mode<synchronous>, transform_indices = @transform_4, window_bounds = array<i64: 1, 32>}, {pipeline_mode = #tpu.pipeline_mode<synchronous>, transform_indices = @transform_5, window_bounds = array<i64: 160, 32>}, {pipeline_mode = #tpu.pipeline_mode<synchronous>, transform_indices = @transform_6, window_bounds = array<i64: 1, 32>}, {pipeline_mode = #tpu.pipeline_mode<synchronous>, transform_indices = @transform_7, window_bounds = array<i64: 32, 32>}, {transform_indices = @transform_8, window_bounds = array<i64: 1, 8, 32>}, {transform_indices = @transform_9, window_bounds = array<i64: 1, 8, 32>}]} {
    %cst = arith.constant 0.000000e+00 : f32
    %0 = vector.broadcast %cst : f32 to vector<4x32xf32>
    %c0 = arith.constant 0 : index
    %c0_0 = arith.constant 0 : index
    %c0_1 = arith.constant 0 : index
    %1 = vector.load %arg1[%c0, %c0_0, %c0_1] : memref<1x8x32xf32, #tpu.memory_space<vmem>>, vector<1x8x32xf32>
    %2 = vector.shape_cast %1 : vector<1x8x32xf32> to vector<8x32xf32>
    %3 = tpu.concatenate %0, %2 in 0 : vector<4x32xf32>, vector<8x32xf32> -> vector<12x32xf32>
    %c0_2 = arith.constant 0 : index
    %c0_3 = arith.constant 0 : index
    %c0_4 = arith.constant 0 : index
    %4 = vector.load %arg2[%c0_2, %c0_3, %c0_4] : memref<1x8x32xf32, #tpu.memory_space<vmem>>, vector<1x8x32xf32>
    %5 = vector.shape_cast %4 : vector<1x8x32xf32> to vector<8x32xf32>
    %6 = tpu.concatenate %0, %5 in 0 : vector<4x32xf32>, vector<8x32xf32> -> vector<12x32xf32>
    %7 = vector.extract_strided_slice %3 {offsets = [0, 0], sizes = [8, 32], strides = [1, 1]} : vector<12x32xf32> to vector<8x32xf32>
    %8 = vector.extract_strided_slice %3 {offsets = [1, 0], sizes = [8, 32], strides = [1, 1]} : vector<12x32xf32> to vector<8x32xf32>
    %9 = vector.extract_strided_slice %3 {offsets = [2, 0], sizes = [8, 32], strides = [1, 1]} : vector<12x32xf32> to vector<8x32xf32>
    %10 = vector.extract_strided_slice %3 {offsets = [3, 0], sizes = [8, 32], strides = [1, 1]} : vector<12x32xf32> to vector<8x32xf32>
    %11 = vector.extract_strided_slice %3 {offsets = [4, 0], sizes = [8, 32], strides = [1, 1]} : vector<12x32xf32> to vector<8x32xf32>
    %12 = tpu.concatenate %7, %8, %9, %10, %11 in 1 : vector<8x32xf32>, vector<8x32xf32>, vector<8x32xf32>, vector<8x32xf32>, vector<8x32xf32> -> vector<8x160xf32>
    %13 = vector.extract_strided_slice %6 {offsets = [0, 0], sizes = [8, 32], strides = [1, 1]} : vector<12x32xf32> to vector<8x32xf32>
    %14 = vector.extract_strided_slice %6 {offsets = [1, 0], sizes = [8, 32], strides = [1, 1]} : vector<12x32xf32> to vector<8x32xf32>
    %15 = vector.extract_strided_slice %6 {offsets = [2, 0], sizes = [8, 32], strides = [1, 1]} : vector<12x32xf32> to vector<8x32xf32>
    %16 = vector.extract_strided_slice %6 {offsets = [3, 0], sizes = [8, 32], strides = [1, 1]} : vector<12x32xf32> to vector<8x32xf32>
    %17 = vector.extract_strided_slice %6 {offsets = [4, 0], sizes = [8, 32], strides = [1, 1]} : vector<12x32xf32> to vector<8x32xf32>
    %18 = tpu.concatenate %13, %14, %15, %16, %17 in 1 : vector<8x32xf32>, vector<8x32xf32>, vector<8x32xf32>, vector<8x32xf32>, vector<8x32xf32> -> vector<8x160xf32>
    %c0_5 = arith.constant 0 : index
    %c0_6 = arith.constant 0 : index
    %19 = vector.load %arg4[%c0_5, %c0_6] : memref<160x32xf32, #tpu.memory_space<vmem>>, vector<160x32xf32>
    %cst_7 = arith.constant dense<0.000000e+00> : vector<8x32xf32>
    %20 = tpu.matmul %12, %19, %cst_7 {dimension_numbers = #tpu.dot_dimension_numbers<[1], [0], [0], [1], [0, 0, 1, 1], [], []>} : vector<8x160xf32>, vector<160x32xf32>, vector<8x32xf32> -> vector<8x32xf32>
    %c0_8 = arith.constant 0 : index
    %c0_9 = arith.constant 0 : index
    %21 = vector.load %arg5[%c0_8, %c0_9] : memref<1x32xf32, #tpu.memory_space<vmem>>, vector<1x32xf32>
    %22 = vector.broadcast %21 : vector<1x32xf32> to vector<8x32xf32>
    %23 = arith.addf %20, %22 : vector<8x32xf32>
    %c0_10 = arith.constant 0 : index
    %c0_11 = arith.constant 0 : index
    %24 = vector.load %arg6[%c0_10, %c0_11] : memref<160x32xf32, #tpu.memory_space<vmem>>, vector<160x32xf32>
    %cst_12 = arith.constant dense<0.000000e+00> : vector<8x32xf32>
    %25 = tpu.matmul %18, %24, %cst_12 {dimension_numbers = #tpu.dot_dimension_numbers<[1], [0], [0], [1], [0, 0, 1, 1], [], []>} : vector<8x160xf32>, vector<160x32xf32>, vector<8x32xf32> -> vector<8x32xf32>
    %c0_13 = arith.constant 0 : index
    %c0_14 = arith.constant 0 : index
    %26 = vector.load %arg7[%c0_13, %c0_14] : memref<1x32xf32, #tpu.memory_space<vmem>>, vector<1x32xf32>
    %27 = vector.broadcast %26 : vector<1x32xf32> to vector<8x32xf32>
    %28 = arith.addf %25, %27 : vector<8x32xf32>
    %c0_15 = arith.constant 0 : index
    %c0_16 = arith.constant 0 : index
    %c0_17 = arith.constant 0 : index
    %29 = vector.load %arg3[%c0_15, %c0_16, %c0_17] : memref<1x8x32xf32, #tpu.memory_space<vmem>>, vector<1x8x32xf32>
    %30 = vector.shape_cast %29 : vector<1x8x32xf32> to vector<8x32xf32>
    %c0_18 = arith.constant 0 : index
    %c0_19 = arith.constant 0 : index
    %31 = vector.load %arg8[%c0_18, %c0_19] : memref<32x32xf32, #tpu.memory_space<vmem>>, vector<32x32xf32>
    %cst_20 = arith.constant dense<0.000000e+00> : vector<8x32xf32>
    %32 = tpu.matmul %30, %31, %cst_20 {dimension_numbers = #tpu.dot_dimension_numbers<[1], [0], [0], [1], [0, 0, 1, 1], [], []>} : vector<8x32xf32>, vector<32x32xf32>, vector<8x32xf32> -> vector<8x32xf32>
    %cst_21 = arith.constant 0.000000e+00 : f32
    %33 = vector.broadcast %cst_21 : f32 to vector<8x8xf32>
    %34 = vector.extract_strided_slice %23 {offsets = [0, 0], sizes = [8, 8], strides = [1, 1]} : vector<8x32xf32> to vector<8x8xf32>
    %35 = vector.extract_strided_slice %28 {offsets = [0, 0], sizes = [8, 8], strides = [1, 1]} : vector<8x32xf32> to vector<8x8xf32>
    %cst_22 = arith.constant dense<0.000000e+00> : vector<8x8xf32>
    %36 = tpu.matmul %34, %35, %cst_22 {dimension_numbers = #tpu.dot_dimension_numbers<[1], [1], [0], [0], [0, 0, 1, 0], [], []>} : vector<8x8xf32>, vector<8x8xf32>, vector<8x8xf32> -> vector<8x8xf32>
    %cst_23 = arith.constant dense<0xFF800000> : vector<8xf32>
    %37 = vector.multi_reduction <maximumf>, %36, %cst_23 [1] : vector<8x8xf32> to vector<8xf32>
    %38 = vector.shape_cast %37 : vector<8xf32> to vector<8x1xf32>
    %39 = vector.broadcast %38 : vector<8x1xf32> to vector<8x8xf32>
    %40 = arith.subf %36, %39 : vector<8x8xf32>
    %41 = math.exp %40 : vector<8x8xf32>
    %cst_24 = arith.constant dense<0.000000e+00> : vector<8xf32>
    %42 = vector.multi_reduction <add>, %41, %cst_24 [1] : vector<8x8xf32> to vector<8xf32>
    %43 = vector.shape_cast %42 : vector<8xf32> to vector<8x1xf32>
    %44 = vector.broadcast %43 : vector<8x1xf32> to vector<8x8xf32>
    %45 = arith.divf %41, %44 : vector<8x8xf32>
    %46 = arith.addf %33, %45 : vector<8x8xf32>
    %47 = vector.extract_strided_slice %23 {offsets = [0, 8], sizes = [8, 8], strides = [1, 1]} : vector<8x32xf32> to vector<8x8xf32>
    %48 = vector.extract_strided_slice %28 {offsets = [0, 8], sizes = [8, 8], strides = [1, 1]} : vector<8x32xf32> to vector<8x8xf32>
    %cst_25 = arith.constant dense<0.000000e+00> : vector<8x8xf32>
    %49 = tpu.matmul %47, %48, %cst_25 {dimension_numbers = #tpu.dot_dimension_numbers<[1], [1], [0], [0], [0, 0, 1, 0], [], []>} : vector<8x8xf32>, vector<8x8xf32>, vector<8x8xf32> -> vector<8x8xf32>
    %cst_26 = arith.constant dense<0xFF800000> : vector<8xf32>
    %50 = vector.multi_reduction <maximumf>, %49, %cst_26 [1] : vector<8x8xf32> to vector<8xf32>
    %51 = vector.shape_cast %50 : vector<8xf32> to vector<8x1xf32>
    %52 = vector.broadcast %51 : vector<8x1xf32> to vector<8x8xf32>
    %53 = arith.subf %49, %52 : vector<8x8xf32>
    %54 = math.exp %53 : vector<8x8xf32>
    %cst_27 = arith.constant dense<0.000000e+00> : vector<8xf32>
    %55 = vector.multi_reduction <add>, %54, %cst_27 [1] : vector<8x8xf32> to vector<8xf32>
    %56 = vector.shape_cast %55 : vector<8xf32> to vector<8x1xf32>
    %57 = vector.broadcast %56 : vector<8x1xf32> to vector<8x8xf32>
    %58 = arith.divf %54, %57 : vector<8x8xf32>
    %59 = arith.addf %46, %58 : vector<8x8xf32>
    %60 = vector.extract_strided_slice %23 {offsets = [0, 16], sizes = [8, 8], strides = [1, 1]} : vector<8x32xf32> to vector<8x8xf32>
    %61 = vector.extract_strided_slice %28 {offsets = [0, 16], sizes = [8, 8], strides = [1, 1]} : vector<8x32xf32> to vector<8x8xf32>
    %cst_28 = arith.constant dense<0.000000e+00> : vector<8x8xf32>
    %62 = tpu.matmul %60, %61, %cst_28 {dimension_numbers = #tpu.dot_dimension_numbers<[1], [1], [0], [0], [0, 0, 1, 0], [], []>} : vector<8x8xf32>, vector<8x8xf32>, vector<8x8xf32> -> vector<8x8xf32>
    %cst_29 = arith.constant dense<0xFF800000> : vector<8xf32>
    %63 = vector.multi_reduction <maximumf>, %62, %cst_29 [1] : vector<8x8xf32> to vector<8xf32>
    %64 = vector.shape_cast %63 : vector<8xf32> to vector<8x1xf32>
    %65 = vector.broadcast %64 : vector<8x1xf32> to vector<8x8xf32>
    %66 = arith.subf %62, %65 : vector<8x8xf32>
    %67 = math.exp %66 : vector<8x8xf32>
    %cst_30 = arith.constant dense<0.000000e+00> : vector<8xf32>
    %68 = vector.multi_reduction <add>, %67, %cst_30 [1] : vector<8x8xf32> to vector<8xf32>
    %69 = vector.shape_cast %68 : vector<8xf32> to vector<8x1xf32>
    %70 = vector.broadcast %69 : vector<8x1xf32> to vector<8x8xf32>
    %71 = arith.divf %67, %70 : vector<8x8xf32>
    %72 = arith.addf %59, %71 : vector<8x8xf32>
    %73 = vector.extract_strided_slice %23 {offsets = [0, 24], sizes = [8, 8], strides = [1, 1]} : vector<8x32xf32> to vector<8x8xf32>
    %74 = vector.extract_strided_slice %28 {offsets = [0, 24], sizes = [8, 8], strides = [1, 1]} : vector<8x32xf32> to vector<8x8xf32>
    %cst_31 = arith.constant dense<0.000000e+00> : vector<8x8xf32>
    %75 = tpu.matmul %73, %74, %cst_31 {dimension_numbers = #tpu.dot_dimension_numbers<[1], [1], [0], [0], [0, 0, 1, 0], [], []>} : vector<8x8xf32>, vector<8x8xf32>, vector<8x8xf32> -> vector<8x8xf32>
    %cst_32 = arith.constant dense<0xFF800000> : vector<8xf32>
    %76 = vector.multi_reduction <maximumf>, %75, %cst_32 [1] : vector<8x8xf32> to vector<8xf32>
    %77 = vector.shape_cast %76 : vector<8xf32> to vector<8x1xf32>
    %78 = vector.broadcast %77 : vector<8x1xf32> to vector<8x8xf32>
    %79 = arith.subf %75, %78 : vector<8x8xf32>
    %80 = math.exp %79 : vector<8x8xf32>
    %cst_33 = arith.constant dense<0.000000e+00> : vector<8xf32>
    %81 = vector.multi_reduction <add>, %80, %cst_33 [1] : vector<8x8xf32> to vector<8xf32>
    %82 = vector.shape_cast %81 : vector<8xf32> to vector<8x1xf32>
    %83 = vector.broadcast %82 : vector<8x1xf32> to vector<8x8xf32>
    %84 = arith.divf %80, %83 : vector<8x8xf32>
    %85 = arith.addf %72, %84 : vector<8x8xf32>
    %cst_34 = arith.constant dense<0.000000e+00> : vector<8x32xf32>
    %86 = tpu.matmul %85, %32, %cst_34 {dimension_numbers = #tpu.dot_dimension_numbers<[1], [0], [0], [1], [0, 0, 1, 1], [], []>} : vector<8x8xf32>, vector<8x32xf32>, vector<8x32xf32> -> vector<8x32xf32>
    %c0_35 = arith.constant 0 : index
    %c0_36 = arith.constant 0 : index
    %c0_37 = arith.constant 0 : index
    %87 = vector.load %arg9[%c0_35, %c0_36, %c0_37] : memref<1x8x32xf32, #tpu.memory_space<vmem>>, vector<1x8x32xf32>
    %88 = vector.shape_cast %87 : vector<1x8x32xf32> to vector<8x32xf32>
    %89 = vector.shape_cast %86 : vector<8x32xf32> to vector<1x8x32xf32>
    tpu.vector_store %arg9[%c0_35, %c0_36, %c0_37], %89 {strides = array<i32>} : memref<1x8x32xf32, #tpu.memory_space<vmem>>, vector<1x8x32xf32>,
    %90 = tpu.concatenate %45, %58, %71, %84 in 1 : vector<8x8xf32>, vector<8x8xf32>, vector<8x8xf32>, vector<8x8xf32> -> vector<8x32xf32>
    %c0_38 = arith.constant 0 : index
    %c0_39 = arith.constant 0 : index
    %c0_40 = arith.constant 0 : index
    %91 = vector.load %arg10[%c0_38, %c0_39, %c0_40] : memref<1x8x32xf32, #tpu.memory_space<vmem>>, vector<1x8x32xf32>
    %92 = vector.shape_cast %91 : vector<1x8x32xf32> to vector<8x32xf32>
    %93 = vector.shape_cast %90 : vector<8x32xf32> to vector<1x8x32xf32>
    tpu.vector_store %arg10[%c0_38, %c0_39, %c0_40], %93 {strides = array<i32>} : memref<1x8x32xf32, #tpu.memory_space<vmem>>, vector<1x8x32xf32>,
    return
  }
  func.func @transform_0(%arg0: i32) -> (i32, i32, i32) {
    %c0_i32 = arith.constant 0 : i32
    %c0_i32_0 = arith.constant 0 : i32
    %c0_i32_1 = arith.constant 0 : i32
    return %arg0, %c0_i32, %c0_i32_0 : i32, i32, i32
  }
  func.func @transform_1(%arg0: i32) -> (i32, i32, i32) {
    %c0_i32 = arith.constant 0 : i32
    %c0_i32_0 = arith.constant 0 : i32
    %c0_i32_1 = arith.constant 0 : i32
    return %arg0, %c0_i32, %c0_i32_0 : i32, i32, i32
  }
  func.func @transform_2(%arg0: i32) -> (i32, i32, i32) {
    %c0_i32 = arith.constant 0 : i32
    %c0_i32_0 = arith.constant 0 : i32
    %c0_i32_1 = arith.constant 0 : i32
    return %arg0, %c0_i32, %c0_i32_0 : i32, i32, i32
  }
  func.func @transform_3(%arg0: i32) -> (i32, i32) {
    %c0_i32 = arith.constant 0 : i32
    %c0_i32_0 = arith.constant 0 : i32
    %c0_i32_1 = arith.constant 0 : i32
    return %c0_i32, %c0_i32_0 : i32, i32
  }
  func.func @transform_4(%arg0: i32) -> (i32, i32) {
    %c0_i32 = arith.constant 0 : i32
    %c0_i32_0 = arith.constant 0 : i32
    %c0_i32_1 = arith.constant 0 : i32
    return %c0_i32, %c0_i32_0 : i32, i32
  }
  func.func @transform_5(%arg0: i32) -> (i32, i32) {
    %c0_i32 = arith.constant 0 : i32
    %c0_i32_0 = arith.constant 0 : i32
    %c0_i32_1 = arith.constant 0 : i32
    return %c0_i32, %c0_i32_0 : i32, i32
  }
  func.func @transform_6(%arg0: i32) -> (i32, i32) {
    %c0_i32 = arith.constant 0 : i32
    %c0_i32_0 = arith.constant 0 : i32
    %c0_i32_1 = arith.constant 0 : i32
    return %c0_i32, %c0_i32_0 : i32, i32
  }
  func.func @transform_7(%arg0: i32) -> (i32, i32) {
    %c0_i32 = arith.constant 0 : i32
    %c0_i32_0 = arith.constant 0 : i32
    %c0_i32_1 = arith.constant 0 : i32
    return %c0_i32, %c0_i32_0 : i32, i32
  }
  func.func @transform_8(%arg0: i32) -> (i32, i32, i32) {
    %c0_i32 = arith.constant 0 : i32
    %c0_i32_0 = arith.constant 0 : i32
    %c0_i32_1 = arith.constant 0 : i32
    return %arg0, %c0_i32, %c0_i32_0 : i32, i32, i32
  }
  func.func @transform_9(%arg0: i32) -> (i32, i32, i32) {
    %c0_i32 = arith.constant 0 : i32
    %c0_i32_0 = arith.constant 0 : i32
    %c0_i32_1 = arith.constant 0 : i32
    return %arg0, %c0_i32, %c0_i32_0 : i32, i32, i32
  }
}

</mosaic_0001>

<llo_original>
// kernel: tpu_custom_call.1
$region0: #{tpu_custom_call.1}
  #allocation0 [shape = 'u32[]', space=smem, size = 0x4, offset = 0x4, fixed_abs, tag = 'smem constant byte address 0x4 - core index']
  #allocation1 [shape = 'u32[144,128]{1,0:T(1,128)}', space=vmem, size = 0x12000, scoped, tag = 'internal scratch']
  %s0 = inlined_call_operand.vmem [shape: f32[2,8,32], index: 0, kind: input, shape index: {}]
  %s1 = inlined_call_operand.vmem [shape: f32[2,8,32], index: 1, kind: input, shape index: {}]
  %s2 = inlined_call_operand.vmem [shape: f32[2,8,32], index: 2, kind: input, shape index: {}]
  %s3 = inlined_call_operand.vmem [shape: f32[160,32], index: 3, kind: input, shape index: {}]
  %s4 = inlined_call_operand.vmem [shape: f32[1,32], index: 4, kind: input, shape index: {}]
  %s5 = inlined_call_operand.vmem [shape: f32[160,32], index: 5, kind: input, shape index: {}]
  %s6 = inlined_call_operand.vmem [shape: f32[1,32], index: 6, kind: input, shape index: {}]
  %s7 = inlined_call_operand.vmem [shape: f32[32,32], index: 7, kind: input, shape index: {}]
  %s8 = inlined_call_operand.hbm [shape: f32[2,8,32], index: 8, kind: output, shape index: {0}]
  %s9 = inlined_call_operand.hbm [shape: f32[2,8,32], index: 9, kind: output, shape index: {1}]
  %10 = xla_tuple %s8, %s9
  %s11 = sld [smem:[#allocation0]]
  $region73: #{tpu_custom_call.1} parent=0
    _
  %s13 = ssub.s32 1, %s11
  %s14 = scalar_select 0, %s13, %s11
  $region1: #{tpu_custom_call.1} parent=0
    #allocation2 [shape = 'u8[8192]{0}', space=vmem, size = 0x2000, scoped, tag = 'output window, operand 0']
    #allocation3 [shape = 's32[2]{0}', space=sflag, size = 0x8, scoped, tag = 'scoped memory for tpu_custom_call.1']
    #allocation4 [shape = 'u8[8192]{0}', space=vmem, size = 0x2000, scoped, tag = 'output window, operand 1']
    #allocation5 [shape = 's32[2]{0}', space=sflag, size = 0x8, scoped, tag = 'scoped memory for tpu_custom_call.1']
    %15 = vsyncpa [#allocation3], 0
    %s16 = scalar_lea.sflag [#allocation3], 1
    %17 = vsyncpa %s16, 0
    %18 = vsyncpa [#allocation5], 0
    %s19 = scalar_lea.sflag [#allocation5], 1
    %20 = vsyncpa %s19, 0
    loop: start=0, step=1, limit=4
    $region2: #{tpu_custom_call.1} parent=1 // loop_pre_header
      _
    $region3: #{tpu_custom_call.1} parent=1 // loop_header
      %s22 = sphi 0, %s26
      %p23 = scmp.ge.s32.totalorder %s22, 4
      %s32 = sphi 0, %s34
      %s35 = sphi 0, %s32
      %s36 = sphi 0, %s35
      %s52 = sphi 0, %s36
      %s58 = sphi 0, %s60
      %s61 = sphi 0, %s58
      %s62 = sphi 0, %s61
      %s78 = sphi 0, %s62
      %s84 = sphi 0, %s86
      %s87 = sphi 0, %s84
      %s88 = sphi 0, %s87
      %s104 = sphi 0, %s88
      %s108 = sphi 0, %s108
      %s110 = sphi 0, %s108
      %s111 = sphi 0, %s110
      %s125 = sphi 0, %s111
      %s129 = sphi 0, %s129
      %s131 = sphi 0, %s129
      %s132 = sphi 0, %s131
      %s146 = sphi 0, %s132
      %s150 = sphi 0, %s150
      %s152 = sphi 0, %s150
      %s153 = sphi 0, %s152
      %s167 = sphi 0, %s153
      %s171 = sphi 0, %s171
      %s173 = sphi 0, %s171
      %s174 = sphi 0, %s173
      %s188 = sphi 0, %s174
      %s192 = sphi 0, %s192
      %s194 = sphi 0, %s192
      %s195 = sphi 0, %s194
      %s209 = sphi 0, %s195
      %s215 = sphi 0, %s217
      %s218 = sphi 0, %s215
      %s219 = sphi 0, %s218
      %s235 = sphi 0, %s219
      %s241 = sphi 0, %s243
      %s244 = sphi 0, %s241
      %s245 = sphi 0, %s244
      %s261 = sphi 0, %s245
    $region4: #{tpu_custom_call.1} parent=1 // loop_header_branch
      %25 = sbr.rel (%p23) target = $region8
    $region5: #{tpu_custom_call.1} parent=1 // loop_body
      %s27 = ssub.s32 %s22, 1
      %s28 = ssub.s32 %s22, 2
      %s29 = sadd.s32 %s22, 1
      %s30 = ssub.s32 %s22, %s29
      %p31 = scmp.eq.s32.totalorder %s30, 0
      %s33 = sadd.s32 %s32, 1
      %s34 = scalar_select %p31, %s32, %s33
      %p37 = pneg %p31
      %p38 = scmp.eq.s32.totalorder %s22, 1
      %p39 = por %p37, %p38
      %p40 = scmp.ne.s32.totalorder %s32, %s35
      %p41 = scmp.eq.s32.totalorder %s22, 0
      %p42 = por %p40, %p41
      %p43 = scmp.ne.s32.totalorder %s32, %s35
      %p44 = scmp.eq.s32.totalorder %s27, 1
      %p45 = por %p43, %p44
      %p46 = scmp.ne.s32.totalorder %s35, %s36
      %p47 = scmp.eq.s32.totalorder %s27, 0
      %p48 = por %p46, %p47
      %p49 = scmp.ne.s32.totalorder %s35, %s36
      %p50 = scmp.eq.s32.totalorder %s28, 1
      %p51 = por %p49, %p50
      %p53 = scmp.ne.s32.totalorder %s36, %s52
      %p54 = scmp.eq.s32.totalorder %s28, 0
      %p55 = por %p53, %p54
      %s56 = ssub.s32 %s22, %s29
      %p57 = scmp.eq.s32.totalorder %s56, 0
      %s59 = sadd.s32 %s58, 1
      %s60 = scalar_select %p57, %s58, %s59
      %p63 = pneg %p57
      %p64 = scmp.eq.s32.totalorder %s22, 1
      %p65 = por %p63, %p64
      %p66 = scmp.ne.s32.totalorder %s58, %s61
      %p67 = scmp.eq.s32.totalorder %s22, 0
      %p68 = por %p66, %p67
      %p69 = scmp.ne.s32.totalorder %s58, %s61
      %p70 = scmp.eq.s32.totalorder %s27, 1
      %p71 = por %p69, %p70
      %p72 = scmp.ne.s32.totalorder %s61, %s62
      %p73 = scmp.eq.s32.totalorder %s27, 0
      %p74 = por %p72, %p73
      %p75 = scmp.ne.s32.totalorder %s61, %s62
      %p76 = scmp.eq.s32.totalorder %s28, 1
      %p77 = por %p75, %p76
      %p79 = scmp.ne.s32.totalorder %s62, %s78
      %p80 = scmp.eq.s32.totalorder %s28, 0
      %p81 = por %p79, %p80
      %s82 = ssub.s32 %s22, %s29
      %p83 = scmp.eq.s32.totalorder %s82, 0
      %s85 = sadd.s32 %s84, 1
      %s86 = scalar_select %p83, %s84, %s85
      %p89 = pneg %p83
      %p90 = scmp.eq.s32.totalorder %s22, 1
      %p91 = por %p89, %p90
      %p92 = scmp.ne.s32.totalorder %s84, %s87
      %p93 = scmp.eq.s32.totalorder %s22, 0
      %p94 = por %p92, %p93
      %p95 = scmp.ne.s32.totalorder %s84, %s87
      %p96 = scmp.eq.s32.totalorder %s27, 1
      %p97 = por %p95, %p96
      %p98 = scmp.ne.s32.totalorder %s87, %s88
      %p99 = scmp.eq.s32.totalorder %s27, 0
      %p100 = por %p98, %p99
      %p101 = scmp.ne.s32.totalorder %s87, %s88
      %p102 = scmp.eq.s32.totalorder %s28, 1
      %p103 = por %p101, %p102
      %p105 = scmp.ne.s32.totalorder %s88, %s104
      %p106 = scmp.eq.s32.totalorder %s28, 0
      %p107 = por %p105, %p106
      %s109 = sadd.s32 %s108, 1
      %p112 = scmp.eq.s32.totalorder %s22, 1
      %p113 = scmp.ne.s32.totalorder %s108, %s110
      %p114 = scmp.eq.s32.totalorder %s22, 0
      %p115 = por %p113, %p114
      %p116 = scmp.ne.s32.totalorder %s108, %s110
      %p117 = scmp.eq.s32.totalorder %s27, 1
      %p118 = por %p116, %p117
      %p119 = scmp.ne.s32.totalorder %s110, %s111
      %p120 = scmp.eq.s32.totalorder %s27, 0
      %p121 = por %p119, %p120
      %p122 = scmp.ne.s32.totalorder %s110, %s111
      %p123 = scmp.eq.s32.totalorder %s28, 1
      %p124 = por %p122, %p123
      %p126 = scmp.ne.s32.totalorder %s111, %s125
      %p127 = scmp.eq.s32.totalorder %s28, 0
      %p128 = por %p126, %p127
      %s130 = sadd.s32 %s129, 1
      %p133 = scmp.eq.s32.totalorder %s22, 1
      %p134 = scmp.ne.s32.totalorder %s129, %s131
      %p135 = scmp.eq.s32.totalorder %s22, 0
      %p136 = por %p134, %p135
      %p137 = scmp.ne.s32.totalorder %s129, %s131
      %p138 = scmp.eq.s32.totalorder %s27, 1
      %p139 = por %p137, %p138
      %p140 = scmp.ne.s32.totalorder %s131, %s132
      %p141 = scmp.eq.s32.totalorder %s27, 0
      %p142 = por %p140, %p141
      %p143 = scmp.ne.s32.totalorder %s131, %s132
      %p144 = scmp.eq.s32.totalorder %s28, 1
      %p145 = por %p143, %p144
      %p147 = scmp.ne.s32.totalorder %s132, %s146
      %p148 = scmp.eq.s32.totalorder %s28, 0
      %p149 = por %p147, %p148
      %s151 = sadd.s32 %s150, 1
      %p154 = scmp.eq.s32.totalorder %s22, 1
      %p155 = scmp.ne.s32.totalorder %s150, %s152
      %p156 = scmp.eq.s32.totalorder %s22, 0
      %p157 = por %p155, %p156
      %p158 = scmp.ne.s32.totalorder %s150, %s152
      %p159 = scmp.eq.s32.totalorder %s27, 1
      %p160 = por %p158, %p159
      %p161 = scmp.ne.s32.totalorder %s152, %s153
      %p162 = scmp.eq.s32.totalorder %s27, 0
      %p163 = por %p161, %p162
      %p164 = scmp.ne.s32.totalorder %s152, %s153
      %p165 = scmp.eq.s32.totalorder %s28, 1
      %p166 = por %p164, %p165
      %p168 = scmp.ne.s32.totalorder %s153, %s167
      %p169 = scmp.eq.s32.totalorder %s28, 0
      %p170 = por %p168, %p169
      %s172 = sadd.s32 %s171, 1
      %p175 = scmp.eq.s32.totalorder %s22, 1
      %p176 = scmp.ne.s32.totalorder %s171, %s173
      %p177 = scmp.eq.s32.totalorder %s22, 0
      %p178 = por %p176, %p177
      %p179 = scmp.ne.s32.totalorder %s171, %s173
      %p180 = scmp.eq.s32.totalorder %s27, 1
      %p181 = por %p179, %p180
      %p182 = scmp.ne.s32.totalorder %s173, %s174
      %p183 = scmp.eq.s32.totalorder %s27, 0
      %p184 = por %p182, %p183
      %p185 = scmp.ne.s32.totalorder %s173, %s174
      %p186 = scmp.eq.s32.totalorder %s28, 1
      %p187 = por %p185, %p186
      %p189 = scmp.ne.s32.totalorder %s174, %s188
      %p190 = scmp.eq.s32.totalorder %s28, 0
      %p191 = por %p189, %p190
      %s193 = sadd.s32 %s192, 1
      %p196 = scmp.eq.s32.totalorder %s22, 1
      %p197 = scmp.ne.s32.totalorder %s192, %s194
      %p198 = scmp.eq.s32.totalorder %s22, 0
      %p199 = por %p197, %p198
      %p200 = scmp.ne.s32.totalorder %s192, %s194
      %p201 = scmp.eq.s32.totalorder %s27, 1
      %p202 = por %p200, %p201
      %p203 = scmp.ne.s32.totalorder %s194, %s195
      %p204 = scmp.eq.s32.totalorder %s27, 0
      %p205 = por %p203, %p204
      %p206 = scmp.ne.s32.totalorder %s194, %s195
      %p207 = scmp.eq.s32.totalorder %s28, 1
      %p208 = por %p206, %p207
      %p210 = scmp.ne.s32.totalorder %s195, %s209
      %p211 = scmp.eq.s32.totalorder %s28, 0
      %p212 = por %p210, %p211
      %s213 = ssub.s32 %s22, %s29
      %p214 = scmp.eq.s32.totalorder %s213, 0
      %s216 = sadd.s32 %s215, 1
      %s217 = scalar_select %p214, %s215, %s216
      %p220 = pneg %p214
      %p221 = scmp.eq.s32.totalorder %s22, 1
      %p222 = por %p220, %p221
      %p223 = scmp.ne.s32.totalorder %s215, %s218
      %p224 = scmp.eq.s32.totalorder %s22, 0
      %p225 = por %p223, %p224
      %p226 = scmp.ne.s32.totalorder %s215, %s218
      %p227 = scmp.eq.s32.totalorder %s27, 1
      %p228 = por %p226, %p227
      %p229 = scmp.ne.s32.totalorder %s218, %s219
      %p230 = scmp.eq.s32.totalorder %s27, 0
      %p231 = por %p229, %p230
      %p232 = scmp.ne.s32.totalorder %s218, %s219
      %p233 = scmp.eq.s32.totalorder %s28, 1
      %p234 = por %p232, %p233
      %p236 = scmp.ne.s32.totalorder %s219, %s235
      %p237 = scmp.eq.s32.totalorder %s28, 0
      %p238 = por %p236, %p237
      %s239 = ssub.s32 %s22, %s29
      %p240 = scmp.eq.s32.totalorder %s239, 0
      %s242 = sadd.s32 %s241, 1
      %s243 = scalar_select %p240, %s241, %s242
      %p246 = pneg %p240
      %p247 = scmp.eq.s32.totalorder %s22, 1
      %p248 = por %p246, %p247
      %p249 = scmp.ne.s32.totalorder %s241, %s244
      %p250 = scmp.eq.s32.totalorder %s22, 0
      %p251 = por %p249, %p250
      %p252 = scmp.ne.s32.totalorder %s241, %s244
      %p253 = scmp.eq.s32.totalorder %s27, 1
      %p254 = por %p252, %p253
      %p255 = scmp.ne.s32.totalorder %s244, %s245
      %p256 = scmp.eq.s32.totalorder %s27, 0
      %p257 = por %p255, %p256
      %p258 = scmp.ne.s32.totalorder %s244, %s245
      %p259 = scmp.eq.s32.totalorder %s28, 1
      %p260 = por %p258, %p259
      %p262 = scmp.ne.s32.totalorder %s245, %s261
      %p263 = scmp.eq.s32.totalorder %s28, 0
      %p264 = por %p262, %p263
      %p265 = scmp.le.s32.totalorder 1, %s22
      %p266 = scmp.lt.s32.totalorder %s22, 3
      %p267 = pnand %p265, %p266
      %p268 = pneg %p267
      // Predicated region
      $region9: #{tpu_custom_call.1} parent=5 // pred_check
        _
      $region10: #{tpu_custom_call.1} parent=5 // pred_check_branch
        %270 = sbr.rel (%p267) target = $region12
      $region11: #{tpu_custom_call.1} parent=5 // pred_region
        %s271 = ssub.s32 %s22, 1
        // Predicated region
        $region13: #{tpu_custom_call.1} parent=11 // pred_check
          %p272 = pneg %p121
        $region14: #{tpu_custom_call.1} parent=11 // pred_check_branch
          %274 = sbr.rel (%p272) target = $region16
        $region15: #{tpu_custom_call.1} parent=11 // pred_region
          _
        $region16: #{tpu_custom_call.1} parent=11 // pred_fallthru
          _
        // Predicated region
        $region17: #{tpu_custom_call.1} parent=11 // pred_check
          %p275 = pneg %p142
        $region18: #{tpu_custom_call.1} parent=11 // pred_check_branch
          %277 = sbr.rel (%p275) target = $region20
        $region19: #{tpu_custom_call.1} parent=11 // pred_region
          _
        $region20: #{tpu_custom_call.1} parent=11 // pred_fallthru
          _
        // Predicated region
        $region21: #{tpu_custom_call.1} parent=11 // pred_check
          %p278 = pneg %p163
        $region22: #{tpu_custom_call.1} parent=11 // pred_check_branch
          %280 = sbr.rel (%p278) target = $region24
        $region23: #{tpu_custom_call.1} parent=11 // pred_region
          _
        $region24: #{tpu_custom_call.1} parent=11 // pred_fallthru
          _
        // Predicated region
        $region25: #{tpu_custom_call.1} parent=11 // pred_check
          %p281 = pneg %p184
        $region26: #{tpu_custom_call.1} parent=11 // pred_check_branch
          %283 = sbr.rel (%p281) target = $region28
        $region27: #{tpu_custom_call.1} parent=11 // pred_region
          _
        $region28: #{tpu_custom_call.1} parent=11 // pred_fallthru
          _
        // Predicated region
        $region29: #{tpu_custom_call.1} parent=11 // pred_check
          %p284 = pneg %p205
        $region30: #{tpu_custom_call.1} parent=11 // pred_check_branch
          %286 = sbr.rel (%p284) target = $region32
        $region31: #{tpu_custom_call.1} parent=11 // pred_region
          _
        $region32: #{tpu_custom_call.1} parent=11 // pred_fallthru
          _
      $region12: #{tpu_custom_call.1} parent=5 // pred_fallthru
        _
      %p287 = scmp.lt.s32.totalorder %s22, 2
      // Predicated region
      $region33: #{tpu_custom_call.1} parent=5 // pred_check
        %p288 = pneg %p287
      $region34: #{tpu_custom_call.1} parent=5 // pred_check_branch
        %290 = sbr.rel (%p288) target = $region36
      $region35: #{tpu_custom_call.1} parent=5 // pred_region
        // Predicated region
        $region37: #{tpu_custom_call.1} parent=35 // pred_check
          %p291 = pneg %p42
        $region38: #{tpu_custom_call.1} parent=35 // pred_check_branch
          %293 = sbr.rel (%p291) target = $region40
        $region39: #{tpu_custom_call.1} parent=35 // pred_region
          %p294 = scmp.lt.s32.totalorder %s22, 1
          %s295 = scalar_select %p294, %s22, 1
          %s296 = smul.addr %s295, 8
          %s297 = scalar_lea.vmem %s0, %s296
        $region40: #{tpu_custom_call.1} parent=35 // pred_fallthru
          _
        // Predicated region
        $region41: #{tpu_custom_call.1} parent=35 // pred_check
          %p298 = pneg %p68
        $region42: #{tpu_custom_call.1} parent=35 // pred_check_branch
          %300 = sbr.rel (%p298) target = $region44
        $region43: #{tpu_custom_call.1} parent=35 // pred_region
          %p301 = scmp.lt.s32.totalorder %s22, 1
          %s302 = scalar_select %p301, %s22, 1
          %s303 = smul.addr %s302, 8
          %s304 = scalar_lea.vmem %s1, %s303
        $region44: #{tpu_custom_call.1} parent=35 // pred_fallthru
          _
        // Predicated region
        $region45: #{tpu_custom_call.1} parent=35 // pred_check
          %p305 = pneg %p94
        $region46: #{tpu_custom_call.1} parent=35 // pred_check_branch
          %307 = sbr.rel (%p305) target = $region48
        $region47: #{tpu_custom_call.1} parent=35 // pred_region
          %p308 = scmp.lt.s32.totalorder %s22, 1
          %s309 = scalar_select %p308, %s22, 1
          %s310 = smul.addr %s309, 8
          %s311 = scalar_lea.vmem %s2, %s310
        $region48: #{tpu_custom_call.1} parent=35 // pred_fallthru
          _
      $region36: #{tpu_custom_call.1} parent=5 // pred_fallthru
        _
      %p312 = scmp.le.s32.totalorder 1, %s22
      %p313 = scmp.lt.s32.totalorder %s22, 3
      %p314 = pnand %p312, %p313
      %p315 = pneg %p314
      // Predicated region
      $region49: #{tpu_custom_call.1} parent=5 // pred_check
        _
      $region50: #{tpu_custom_call.1} parent=5 // pred_check_branch
        %317 = sbr.rel (%p314) target = $region52
      $region51: #{tpu_custom_call.1} parent=5 // pred_region
        %s318 = ssub.s32 %s22, 1
        %p319 = scmp.lt.s32.totalorder %s27, 1
        %s320 = scalar_select %p319, %s27, 1
        %s321 = smul.addr %s320, 8
        %s322 = scalar_lea.vmem %s0, %s321
        %p323 = pneg %p48
        %p324 = pneg %p45
        %p325 = scmp.lt.s32.totalorder %s27, 1
        %s326 = scalar_select %p325, %s27, 1
        %s327 = smul.addr %s326, 8
        %s328 = scalar_lea.vmem %s1, %s327
        %p329 = pneg %p74
        %p330 = pneg %p71
        %p331 = scmp.lt.s32.totalorder %s27, 1
        %s332 = scalar_select %p331, %s27, 1
        %s333 = smul.addr %s332, 8
        %s334 = scalar_lea.vmem %s2, %s333
        %p335 = pneg %p100
        %p336 = pneg %p97
        %p337 = pneg %p121
        %p338 = pneg %p118
        %p339 = pneg %p142
        %p340 = pneg %p139
        %p341 = pneg %p163
        %p342 = pneg %p160
        %p343 = pneg %p184
        %p344 = pneg %p181
        %p345 = pneg %p205
        %p346 = pneg %p202
        %p347 = pneg %p231
        %p348 = pneg %p228
        %s349 = sand.u32 %s218, 1
        %s350 = scalar_lea.sflag [#allocation3], %s349
        %s351 = sand.u32 %s218, 1
        %s352 = smul.addr %s351, 8
        %s353 = scalar_lea.vmem [#allocation2], %s352
        %p354 = pneg %p257
        %p355 = pneg %p254
        %s356 = sand.u32 %s244, 1
        %s357 = scalar_lea.sflag [#allocation5], %s356
        %s358 = sand.u32 %s244, 1
        %s359 = smul.addr %s358, 8
        %s360 = scalar_lea.vmem [#allocation4], %s359
        %p361 = scmp.lt.s32.totalorder %s27, 1
        %s362 = scalar_select %p361, %s27, 1
        %s363 = smul.addr %s362, 8
        %s364 = scalar_lea.vmem %s0, %s363
        %p365 = scmp.lt.s32.totalorder %s27, 1
        %s366 = scalar_select %p365, %s27, 1
        %s367 = smul.addr %s366, 8
        %s368 = scalar_lea.vmem %s1, %s367
        %p369 = scmp.lt.s32.totalorder %s27, 1
        %s370 = scalar_select %p369, %s27, 1
        %s371 = smul.addr %s370, 8
        %s372 = scalar_lea.vmem %s2, %s371
        %v373 = vld [vmem:[%s364] sm:$0xff]
        %v375 = vrot.slane %v373, 4
        %vm377 = vcmask 1043456
        %v378 = vsel %vm377, 0.0, %v375
        %v379 = vld [vmem:[%s368] sm:$0xff]
        %v381 = vrot.slane %v379, 4
        %v383 = vsel %vm377, 0.0, %v381
        %vm385 = vcmask 1046528
        %v386 = vrot.slane %v378, 1
        %v387 = vrot.slane %v375, 1
        %v388 = vsel %vm385, %v386, %v387
        %389 = vrot.lane.b32.xlu0 %v388, 32
        %v390 = vpop.permute.xlu0 %389
        %vm392 = vcmask 1045504
        %v393 = vrot.slane %v378, 2
        %v394 = vrot.slane %v375, 2
        %v395 = vsel %vm392, %v393, %v394
        %396 = vrot.lane.b32.xlu0 %v395, 64
        %v397 = vpop.permute.xlu0 %396
        %vm399 = vcmask 1044480
        %v400 = vrot.slane %v378, 3
        %v401 = vrot.slane %v375, 3
        %v402 = vsel %vm399, %v400, %v401
        %403 = vrot.lane.b32.xlu0 %v402, 96
        %v404 = vpop.permute.xlu0 %403
        %v406 = vrot.slane %v378, 4
        %v407 = vrot.slane %v375, 4
        %v408 = vsel %vm377, %v406, %v407
        %vm409 = vcmask 261120
        %v410 = vsel %vm409, %v378, %v390
        %vm411 = vcmask 523264
        %v412 = vsel %vm411, %v410, %v397
        %vm413 = vcmask 785408
        %v414 = vsel %vm413, %v412, %v404
        %v416 = vrot.slane %v383, 1
        %v417 = vrot.slane %v381, 1
        %v418 = vsel %vm385, %v416, %v417
        %419 = vrot.lane.b32.xlu0 %v418, 32
        %v420 = vpop.permute.xlu0 %419
        %v422 = vrot.slane %v383, 2
        %v423 = vrot.slane %v381, 2
        %v424 = vsel %vm392, %v422, %v423
        %425 = vrot.lane.b32.xlu0 %v424, 64
        %v426 = vpop.permute.xlu0 %425
        %v428 = vrot.slane %v383, 3
        %v429 = vrot.slane %v381, 3
        %v430 = vsel %vm399, %v428, %v429
        %431 = vrot.lane.b32.xlu0 %v430, 96
        %v432 = vpop.permute.xlu0 %431
        %v434 = vrot.slane %v383, 4
        %v435 = vrot.slane %v381, 4
        %v436 = vsel %vm377, %v434, %v435
        %v437 = vsel %vm409, %v383, %v420
        %v438 = vsel %vm411, %v437, %v426
        %v439 = vsel %vm413, %v438, %v432
        %v440 = vld [vmem:[%s3] sm:$0xff]
        %v441 = vld [vmem:[%s3 + $0x8] sm:$0xff]
        %v442 = vld [vmem:[%s3 + $0x10] sm:$0xff]
        %v443 = vld [vmem:[%s3 + $0x18] sm:$0xff]
        %v444 = vld [vmem:[%s3 + $0x20] sm:$0xff]
        %v445 = vld [vmem:[%s3 + $0x28] sm:$0xff]
        %v446 = vld [vmem:[%s3 + $0x30] sm:$0xff]
        %v447 = vld [vmem:[%s3 + $0x38] sm:$0xff]
        %v448 = vld [vmem:[%s3 + $0x40] sm:$0xff]
        %v449 = vld [vmem:[%s3 + $0x48] sm:$0xff]
        %v450 = vld [vmem:[%s3 + $0x50] sm:$0xff]
        %v451 = vld [vmem:[%s3 + $0x58] sm:$0xff]
        %v452 = vld [vmem:[%s3 + $0x60] sm:$0xff]
        %v453 = vld [vmem:[%s3 + $0x68] sm:$0xff]
        %v454 = vld [vmem:[%s3 + $0x70] sm:$0xff]
        %v455 = vld [vmem:[%s3 + $0x78] sm:$0xff]
        %v456 = vld [vmem:[%s3 + $0x80] sm:$0xff]
        %v457 = vld [vmem:[%s3 + $0x88] sm:$0xff]
        %v458 = vld [vmem:[%s3 + $0x90] sm:$0xff]
        %v459 = vld [vmem:[%s3 + $0x98] sm:$0xff]
        %v460 = vld [vmem:[%s4] sm:$0x1]
        %v462 = vlaneseq
        %v463 = vshrl.u32 %v462, 7
        %v464 = vsub.s32 0, %v463
        %v465 = vrot.slane %v460, %v464
        %v467 = vsel %vm409, %v408, 0
        %469 = vmatprep.subr.mxu0 0.0
        %470 = vmatpush1.msra.mxu0 %v440
        %471 = vmatprep.subr.mxu0 0.0
        %472 = vmatpush1.msra.mxu0 %v441
        %473 = vmatprep.subr.mxu0 0.0
        %474 = vmatpush1.msra.mxu0 %v442
        %475 = vmatprep.subr.mxu0 0.0
        %476 = vmatpush1.msra.mxu0 %v443
        %477 = vmatprep.subr.mxu0 0.0
        %478 = vmatpush1.msra.mxu0 %v444
        %479 = vmatprep.subr.mxu0 0.0
        %480 = vmatpush1.msra.mxu0 %v445
        %481 = vmatprep.subr.mxu0 0.0
        %482 = vmatpush1.msra.mxu0 %v446
        %483 = vmatprep.subr.mxu0 0.0
        %484 = vmatpush1.msra.mxu0 %v447
        %485 = vmatprep.subr.mxu0 0.0
        %486 = vmatpush1.msra.mxu0 %v448
        %487 = vmatprep.subr.mxu0 0.0
        %488 = vmatpush1.msra.mxu0 %v449
        %489 = vmatprep.subr.mxu0 0.0
        %490 = vmatpush1.msra.mxu0 %v450
        %491 = vmatprep.subr.mxu0 0.0
        %492 = vmatpush1.msra.mxu0 %v451
        %493 = vmatprep.subr.mxu0 0.0
        %494 = vmatpush1.msra.mxu0 %v452
        %495 = vmatprep.subr.mxu0 0.0
        %496 = vmatpush1.msra.mxu0 %v453
        %497 = vmatprep.subr.mxu0 0.0
        %498 = vmatpush1.msra.mxu0 %v454
        %499 = vmatprep.subr.mxu0 0.0
        %500 = vmatpush1.msra.mxu0 %v455
        %501 = vmatprep.subr.mxu0 0.0
        %502 = vmatpush1.msra.mxu0 %v456
        %503 = vmatprep.subr.mxu0 0.0
        %504 = vmatpush1.msra.mxu0 %v457
        %505 = vmatprep.subr.mxu0 0.0
        %506 = vmatpush1.msra.mxu0 %v458
        %507 = vmatprep.subr.mxu0 0.0
        %508 = vmatpush1.msra.mxu0 %v459
        %509 = vmatprep.subr.mxu0 0.0
        %510 = vmatpush1.msra.mxu0 0.0
        %511 = vmatprep.subr.mxu0 0.0
        %512 = vmatpush1.msra.mxu0 0.0
        %513 = vmatprep.subr.mxu0 0.0
        %514 = vmatpush1.msra.mxu0 0.0
        %515 = vmatprep.subr.mxu0 0.0
        %516 = vmatpush1.msra.mxu0 0.0
        %517 = vmatprep.subr.mxu0 0.0
        %518 = vmatpush1.msra.mxu0 0.0
        %519 = vmatprep.subr.mxu0 0.0
        %520 = vmatpush1.msra.mxu0 0.0
        %521 = vmatprep.subr.mxu0 0.0
        %522 = vmatpush1.msra.mxu0 0.0
        %523 = vmatprep.subr.mxu0 0.0
        %524 = vmatpush1.msra.mxu0 0.0
        %525 = vmatprep.subr.mxu0 0.0
        %526 = vmatpush1.msra.mxu0 0.0
        %527 = vmatprep.subr.mxu0 0.0
        %528 = vmatpush1.msra.mxu0 0.0
        %529 = vmatprep.subr.mxu0 0.0
        %530 = vmatpush1.msra.mxu0 0.0
        %531 = vmatprep.subr.mxu0 0.0
        %532 = vmatpush1.msra.mxu0 0.0
        %533 = vmatprep.mubr.f32.mxu0 %v467
        %534 = vmatmul.mubr.f32.gmra.mrb[0].mxu0 %v414
        %v535 = vpop.f32.mrb[0].mxu0
        %v536 = vadd.f32 %v465, %v535
        %v537 = vpop.f32.mrb[0].mxu0
        %538 = vdwg.mxu0
        %v539 = vld [vmem:[%s5] sm:$0xff]
        %v540 = vld [vmem:[%s5 + $0x8] sm:$0xff]
        %v541 = vld [vmem:[%s5 + $0x10] sm:$0xff]
        %v542 = vld [vmem:[%s5 + $0x18] sm:$0xff]
        %v543 = vld [vmem:[%s5 + $0x20] sm:$0xff]
        %v544 = vld [vmem:[%s5 + $0x28] sm:$0xff]
        %v545 = vld [vmem:[%s5 + $0x30] sm:$0xff]
        %v546 = vld [vmem:[%s5 + $0x38] sm:$0xff]
        %v547 = vld [vmem:[%s5 + $0x40] sm:$0xff]
        %v548 = vld [vmem:[%s5 + $0x48] sm:$0xff]
        %v549 = vld [vmem:[%s5 + $0x50] sm:$0xff]
        %v550 = vld [vmem:[%s5 + $0x58] sm:$0xff]
        %v551 = vld [vmem:[%s5 + $0x60] sm:$0xff]
        %v552 = vld [vmem:[%s5 + $0x68] sm:$0xff]
        %v553 = vld [vmem:[%s5 + $0x70] sm:$0xff]
        %v554 = vld [vmem:[%s5 + $0x78] sm:$0xff]
        %v555 = vld [vmem:[%s5 + $0x80] sm:$0xff]
        %v556 = vld [vmem:[%s5 + $0x88] sm:$0xff]
        %v557 = vld [vmem:[%s5 + $0x90] sm:$0xff]
        %v558 = vld [vmem:[%s5 + $0x98] sm:$0xff]
        %v559 = vld [vmem:[%s6] sm:$0x1]
        %v561 = vlaneseq
        %v562 = vshrl.u32 %v561, 7
        %v563 = vsub.s32 0, %v562
        %v564 = vrot.slane %v559, %v563
        %v566 = vsel %vm409, %v436, 0
        %568 = vmatprep.subr.mxu0 0.0
        %569 = vmatpush1.msra.mxu0 %v539
        %570 = vmatprep.subr.mxu0 0.0
        %571 = vmatpush1.msra.mxu0 %v540
        %572 = vmatprep.subr.mxu0 0.0
        %573 = vmatpush1.msra.mxu0 %v541
        %574 = vmatprep.subr.mxu0 0.0
        %575 = vmatpush1.msra.mxu0 %v542
        %576 = vmatprep.subr.mxu0 0.0
        %577 = vmatpush1.msra.mxu0 %v543
        %578 = vmatprep.subr.mxu0 0.0
        %579 = vmatpush1.msra.mxu0 %v544
        %580 = vmatprep.subr.mxu0 0.0
        %581 = vmatpush1.msra.mxu0 %v545
        %582 = vmatprep.subr.mxu0 0.0
        %583 = vmatpush1.msra.mxu0 %v546
        %584 = vmatprep.subr.mxu0 0.0
        %585 = vmatpush1.msra.mxu0 %v547
        %586 = vmatprep.subr.mxu0 0.0
        %587 = vmatpush1.msra.mxu0 %v548
        %588 = vmatprep.subr.mxu0 0.0
        %589 = vmatpush1.msra.mxu0 %v549
        %590 = vmatprep.subr.mxu0 0.0
        %591 = vmatpush1.msra.mxu0 %v550
        %592 = vmatprep.subr.mxu0 0.0
        %593 = vmatpush1.msra.mxu0 %v551
        %594 = vmatprep.subr.mxu0 0.0
        %595 = vmatpush1.msra.mxu0 %v552
        %596 = vmatprep.subr.mxu0 0.0
        %597 = vmatpush1.msra.mxu0 %v553
        %598 = vmatprep.subr.mxu0 0.0
        %599 = vmatpush1.msra.mxu0 %v554
        %600 = vmatprep.subr.mxu0 0.0
        %601 = vmatpush1.msra.mxu0 %v555
        %602 = vmatprep.subr.mxu0 0.0
        %603 = vmatpush1.msra.mxu0 %v556
        %604 = vmatprep.subr.mxu0 0.0
        %605 = vmatpush1.msra.mxu0 %v557
        %606 = vmatprep.subr.mxu0 0.0
        %607 = vmatpush1.msra.mxu0 %v558
        %608 = vmatprep.subr.mxu0 0.0
        %609 = vmatpush1.msra.mxu0 0.0
        %610 = vmatprep.subr.mxu0 0.0
        %611 = vmatpush1.msra.mxu0 0.0
        %612 = vmatprep.subr.mxu0 0.0
        %613 = vmatpush1.msra.mxu0 0.0
        %614 = vmatprep.subr.mxu0 0.0
        %615 = vmatpush1.msra.mxu0 0.0
        %616 = vmatprep.subr.mxu0 0.0
        %617 = vmatpush1.msra.mxu0 0.0
        %618 = vmatprep.subr.mxu0 0.0
        %619 = vmatpush1.msra.mxu0 0.0
        %620 = vmatprep.subr.mxu0 0.0
        %621 = vmatpush1.msra.mxu0 0.0
        %622 = vmatprep.subr.mxu0 0.0
        %623 = vmatpush1.msra.mxu0 0.0
        %624 = vmatprep.subr.mxu0 0.0
        %625 = vmatpush1.msra.mxu0 0.0
        %626 = vmatprep.subr.mxu0 0.0
        %627 = vmatpush1.msra.mxu0 0.0
        %628 = vmatprep.subr.mxu0 0.0
        %629 = vmatpush1.msra.mxu0 0.0
        %630 = vmatprep.subr.mxu0 0.0
        %631 = vmatpush1.msra.mxu0 0.0
        %632 = vmatprep.mubr.f32.mxu0 %v566
        %633 = vmatmul.mubr.f32.gmra.mrb[0].mxu0 %v439
        %v634 = vpop.f32.mrb[0].mxu0
        %v635 = vadd.f32 %v564, %v634
        %v636 = vpop.f32.mrb[0].mxu0
        %637 = vdwg.mxu0
        %v638 = vld [vmem:[%s372] sm:$0xff]
        %v639 = vld [vmem:[%s7] sm:$0xff]
        %v640 = vld [vmem:[%s7 + $0x8] sm:$0xff]
        %v641 = vld [vmem:[%s7 + $0x10] sm:$0xff]
        %v642 = vld [vmem:[%s7 + $0x18] sm:$0xff]
        %v644 = vsel %vm409, %v638, 0
        %646 = vmatprep.subr.mxu0 0.0
        %647 = vmatpush1.msra.mxu0 %v639
        %648 = vmatprep.subr.mxu0 0.0
        %649 = vmatpush1.msra.mxu0 %v640
        %650 = vmatprep.subr.mxu0 0.0
        %651 = vmatpush1.msra.mxu0 %v641
        %652 = vmatprep.subr.mxu0 0.0
        %653 = vmatpush1.msra.mxu0 %v642
        %654 = vmatprep.subr.mxu0 0.0
        %655 = vmatpush1.msra.mxu0 0.0
        %656 = vmatprep.subr.mxu0 0.0
        %657 = vmatpush1.msra.mxu0 0.0
        %658 = vmatprep.subr.mxu0 0.0
        %659 = vmatpush1.msra.mxu0 0.0
        %660 = vmatprep.subr.mxu0 0.0
        %661 = vmatpush1.msra.mxu0 0.0
        %662 = vmatprep.subr.mxu0 0.0
        %663 = vmatpush1.msra.mxu0 0.0
        %664 = vmatprep.subr.mxu0 0.0
        %665 = vmatpush1.msra.mxu0 0.0
        %666 = vmatprep.subr.mxu0 0.0
        %667 = vmatpush1.msra.mxu0 0.0
        %668 = vmatprep.subr.mxu0 0.0
        %669 = vmatpush1.msra.mxu0 0.0
        %670 = vmatprep.subr.mxu0 0.0
        %671 = vmatpush1.msra.mxu0 0.0
        %672 = vmatprep.subr.mxu0 0.0
        %673 = vmatpush1.msra.mxu0 0.0
        %674 = vmatprep.subr.mxu0 0.0
        %675 = vmatpush1.msra.mxu0 0.0
        %676 = vmatprep.subr.mxu0 0.0
        %677 = vmatpush1.msra.mxu0 0.0
        %678 = vmatprep.subr.mxu0 0.0
        %679 = vmatpush1.msra.mxu0 0.0
        %680 = vmatprep.subr.mxu0 0.0
        %681 = vmatpush1.msra.mxu0 0.0
        %682 = vmatprep.subr.mxu0 0.0
        %683 = vmatpush1.msra.mxu0 0.0
        %684 = vmatprep.subr.mxu0 0.0
        %685 = vmatpush1.msra.mxu0 0.0
        %686 = vmatprep.subr.mxu0 0.0
        %687 = vmatpush1.msra.mxu0 0.0
        %688 = vmatprep.subr.mxu0 0.0
        %689 = vmatpush1.msra.mxu0 0.0
        %690 = vmatprep.subr.mxu0 0.0
        %691 = vmatpush1.msra.mxu0 0.0
        %692 = vmatprep.subr.mxu0 0.0
        %693 = vmatpush1.msra.mxu0 0.0
        %694 = vmatprep.subr.mxu0 0.0
        %695 = vmatpush1.msra.mxu0 0.0
        %696 = vmatprep.subr.mxu0 0.0
        %697 = vmatpush1.msra.mxu0 0.0
        %698 = vmatprep.subr.mxu0 0.0
        %699 = vmatpush1.msra.mxu0 0.0
        %700 = vmatprep.subr.mxu0 0.0
        %701 = vmatpush1.msra.mxu0 0.0
        %702 = vmatprep.subr.mxu0 0.0
        %703 = vmatpush1.msra.mxu0 0.0
        %704 = vmatprep.subr.mxu0 0.0
        %705 = vmatpush1.msra.mxu0 0.0
        %706 = vmatprep.subr.mxu0 0.0
        %707 = vmatpush1.msra.mxu0 0.0
        %708 = vmatprep.subr.mxu0 0.0
        %709 = vmatpush1.msra.mxu0 0.0
        %710 = vmatprep.mubr.f32.mxu0 0.0
        %711 = vmatmul.mubr.f32.gmra.mrb[0].mxu0 %v644
        %v712 = vpop.f32.mrb[0].mxu0
        %v713 = vadd.f32 0.0, %v712
        %v714 = vpop.f32.mrb[0].mxu0
        %715 = vdwg.mxu0
        %vm716 = vcmask 64512
        %v718 = vsel %vm716, %v536, 0
        %v721 = vsel %vm716, %v635, 0
        %723 = vmatprep.subr.mxu0 0.0
        %724 = vmatpush1.xpose.msra.mxu0 %v721
        %725 = vmatprep.subr.mxu0 0.0
        %726 = vmatpush1.xpose.msra.mxu0 0.0
        %727 = vmatprep.subr.mxu0 0.0
        %728 = vmatpush1.xpose.msra.mxu0 0.0
        %729 = vmatprep.subr.mxu0 0.0
        %730 = vmatpush1.xpose.msra.mxu0 0.0
        %731 = vmatprep.subr.mxu0 0.0
        %732 = vmatpush1.xpose.msra.mxu0 0.0
        %733 = vmatprep.subr.mxu0 0.0
        %734 = vmatpush1.xpose.msra.mxu0 0.0
        %735 = vmatprep.subr.mxu0 0.0
        %736 = vmatpush1.xpose.msra.mxu0 0.0
        %737 = vmatprep.subr.mxu0 0.0
        %738 = vmatpush1.xpose.msra.mxu0 0.0
        %739 = vmatprep.subr.mxu0 0.0
        %740 = vmatpush1.xpose.msra.mxu0 0.0
        %741 = vmatprep.subr.mxu0 0.0
        %742 = vmatpush1.xpose.msra.mxu0 0.0
        %743 = vmatprep.subr.mxu0 0.0
        %744 = vmatpush1.xpose.msra.mxu0 0.0
        %745 = vmatprep.subr.mxu0 0.0
        %746 = vmatpush1.xpose.msra.mxu0 0.0
        %747 = vmatprep.subr.mxu0 0.0
        %748 = vmatpush1.xpose.msra.mxu0 0.0
        %749 = vmatprep.subr.mxu0 0.0
        %750 = vmatpush1.xpose.msra.mxu0 0.0
        %751 = vmatprep.subr.mxu0 0.0
        %752 = vmatpush1.xpose.msra.mxu0 0.0
        %753 = vmatprep.subr.mxu0 0.0
        %754 = vmatpush1.xpose.msra.mxu0 0.0
        %755 = vmatprep.subr.mxu0 0.0
        %756 = vmatpush1.xpose.msra.mxu0 0.0
        %757 = vmatprep.subr.mxu0 0.0
        %758 = vmatpush1.xpose.msra.mxu0 0.0
        %759 = vmatprep.subr.mxu0 0.0
        %760 = vmatpush1.xpose.msra.mxu0 0.0
        %761 = vmatprep.subr.mxu0 0.0
        %762 = vmatpush1.xpose.msra.mxu0 0.0
        %763 = vmatprep.subr.mxu0 0.0
        %764 = vmatpush1.xpose.msra.mxu0 0.0
        %765 = vmatprep.subr.mxu0 0.0
        %766 = vmatpush1.xpose.msra.mxu0 0.0
        %767 = vmatprep.subr.mxu0 0.0
        %768 = vmatpush1.xpose.msra.mxu0 0.0
        %769 = vmatprep.subr.mxu0 0.0
        %770 = vmatpush1.xpose.msra.mxu0 0.0
        %771 = vmatprep.subr.mxu0 0.0
        %772 = vmatpush1.xpose.msra.mxu0 0.0
        %773 = vmatprep.subr.mxu0 0.0
        %774 = vmatpush1.xpose.msra.mxu0 0.0
        %775 = vmatprep.subr.mxu0 0.0
        %776 = vmatpush1.xpose.msra.mxu0 0.0
        %777 = vmatprep.subr.mxu0 0.0
        %778 = vmatpush1.xpose.msra.mxu0 0.0
        %779 = vmatprep.subr.mxu0 0.0
        %780 = vmatpush1.xpose.msra.mxu0 0.0
        %781 = vmatprep.subr.mxu0 0.0
        %782 = vmatpush1.xpose.msra.mxu0 0.0
        %783 = vmatprep.subr.mxu0 0.0
        %784 = vmatpush1.xpose.msra.mxu0 0.0
        %785 = vmatprep.subr.mxu0 0.0
        %786 = vmatpush1.xpose.msra.mxu0 0.0
        %787 = vmatprep.mubr.f32.mxu0 0.0
        %788 = vmatmul.mubr.f32.gmra.mrb[0].mxu0 %v718
        %v789 = vpop.f32.mrb[0].mxu0
        %v790 = vadd.f32 0.0, %v789
        %v791 = vpop.f32.mrb[0].mxu0
        %792 = vdwg.mxu0
        %v793 = vsel %vm716, %v790, -inf
        %794 = vmax.xlane.f32.xlu0 %v793
        %v795 = vpop.xlane.xlu0 %794
        %v796 = vsub.f32 %v790, %v795
        %v797 = vmul.f32 %v796, 1.442695
        %v798 = vpow.pop %v797
        %v799 = vsel %vm716, %v798, 0.0
        %800 = vadd.xlane.f32.xlu0 %v799
        %v801 = vpop.xlane.xlu0 %800
        %v802 = vrcp.pop %v801
        %v803 = vmul.f32 %v798, %v802
        %v804 = vadd.f32 %v803, 0.0
        %805 = vrot.lane.b32.xlu0 %v536, 120
        %v806 = vpop.permute.xlu0 %805
        %807 = vrot.lane.b32.xlu0 %v635, 120
        %v808 = vpop.permute.xlu0 %807
        %v809 = vsel %vm716, %v806, 0
        %v811 = vsel %vm716, %v808, 0
        %813 = vmatprep.subr.mxu0 0.0
        %814 = vmatpush1.xpose.msra.mxu0 %v811
        %815 = vmatprep.subr.mxu0 0.0
        %816 = vmatpush1.xpose.msra.mxu0 0.0
        %817 = vmatprep.subr.mxu0 0.0
        %818 = vmatpush1.xpose.msra.mxu0 0.0
        %819 = vmatprep.subr.mxu0 0.0
        %820 = vmatpush1.xpose.msra.mxu0 0.0
        %821 = vmatprep.subr.mxu0 0.0
        %822 = vmatpush1.xpose.msra.mxu0 0.0
        %823 = vmatprep.subr.mxu0 0.0
        %824 = vmatpush1.xpose.msra.mxu0 0.0
        %825 = vmatprep.subr.mxu0 0.0
        %826 = vmatpush1.xpose.msra.mxu0 0.0
        %827 = vmatprep.subr.mxu0 0.0
        %828 = vmatpush1.xpose.msra.mxu0 0.0
        %829 = vmatprep.subr.mxu0 0.0
        %830 = vmatpush1.xpose.msra.mxu0 0.0
        %831 = vmatprep.subr.mxu0 0.0
        %832 = vmatpush1.xpose.msra.mxu0 0.0
        %833 = vmatprep.subr.mxu0 0.0
        %834 = vmatpush1.xpose.msra.mxu0 0.0
        %835 = vmatprep.subr.mxu0 0.0
        %836 = vmatpush1.xpose.msra.mxu0 0.0
        %837 = vmatprep.subr.mxu0 0.0
        %838 = vmatpush1.xpose.msra.mxu0 0.0
        %839 = vmatprep.subr.mxu0 0.0
        %840 = vmatpush1.xpose.msra.mxu0 0.0
        %841 = vmatprep.subr.mxu0 0.0
        %842 = vmatpush1.xpose.msra.mxu0 0.0
        %843 = vmatprep.subr.mxu0 0.0
        %844 = vmatpush1.xpose.msra.mxu0 0.0
        %845 = vmatprep.subr.mxu0 0.0
        %846 = vmatpush1.xpose.msra.mxu0 0.0
        %847 = vmatprep.subr.mxu0 0.0
        %848 = vmatpush1.xpose.msra.mxu0 0.0
        %849 = vmatprep.subr.mxu0 0.0
        %850 = vmatpush1.xpose.msra.mxu0 0.0
        %851 = vmatprep.subr.mxu0 0.0
        %852 = vmatpush1.xpose.msra.mxu0 0.0
        %853 = vmatprep.subr.mxu0 0.0
        %854 = vmatpush1.xpose.msra.mxu0 0.0
        %855 = vmatprep.subr.mxu0 0.0
        %856 = vmatpush1.xpose.msra.mxu0 0.0
        %857 = vmatprep.subr.mxu0 0.0
        %858 = vmatpush1.xpose.msra.mxu0 0.0
        %859 = vmatprep.subr.mxu0 0.0
        %860 = vmatpush1.xpose.msra.mxu0 0.0
        %861 = vmatprep.subr.mxu0 0.0
        %862 = vmatpush1.xpose.msra.mxu0 0.0
        %863 = vmatprep.subr.mxu0 0.0
        %864 = vmatpush1.xpose.msra.mxu0 0.0
        %865 = vmatprep.subr.mxu0 0.0
        %866 = vmatpush1.xpose.msra.mxu0 0.0
        %867 = vmatprep.subr.mxu0 0.0
        %868 = vmatpush1.xpose.msra.mxu0 0.0
        %869 = vmatprep.subr.mxu0 0.0
        %870 = vmatpush1.xpose.msra.mxu0 0.0
        %871 = vmatprep.subr.mxu0 0.0
        %872 = vmatpush1.xpose.msra.mxu0 0.0
        %873 = vmatprep.subr.mxu0 0.0
        %874 = vmatpush1.xpose.msra.mxu0 0.0
        %875 = vmatprep.subr.mxu0 0.0
        %876 = vmatpush1.xpose.msra.mxu0 0.0
        %877 = vmatprep.mubr.f32.mxu0 0.0
        %878 = vmatmul.mubr.f32.gmra.mrb[0].mxu0 %v809
        %v879 = vpop.f32.mrb[0].mxu0
        %v880 = vadd.f32 0.0, %v879
        %v881 = vpop.f32.mrb[0].mxu0
        %882 = vdwg.mxu0
        %v883 = vsel %vm716, %v880, -inf
        %884 = vmax.xlane.f32.xlu0 %v883
        %v885 = vpop.xlane.xlu0 %884
        %v886 = vsub.f32 %v880, %v885
        %v887 = vmul.f32 %v886, 1.442695
        %v888 = vpow.pop %v887
        %v889 = vsel %vm716, %v888, 0.0
        %890 = vadd.xlane.f32.xlu0 %v889
        %v891 = vpop.xlane.xlu0 %890
        %v892 = vrcp.pop %v891
        %v893 = vmul.f32 %v888, %v892
        %v894 = vadd.f32 %v804, %v893
        %895 = vrot.lane.b32.xlu0 %v536, 112
        %v896 = vpop.permute.xlu0 %895
        %897 = vrot.lane.b32.xlu0 %v635, 112
        %v898 = vpop.permute.xlu0 %897
        %v899 = vsel %vm716, %v896, 0
        %v901 = vsel %vm716, %v898, 0
        %903 = vmatprep.subr.mxu0 0.0
        %904 = vmatpush1.xpose.msra.mxu0 %v901
        %905 = vmatprep.subr.mxu0 0.0
        %906 = vmatpush1.xpose.msra.mxu0 0.0
        %907 = vmatprep.subr.mxu0 0.0
        %908 = vmatpush1.xpose.msra.mxu0 0.0
        %909 = vmatprep.subr.mxu0 0.0
        %910 = vmatpush1.xpose.msra.mxu0 0.0
        %911 = vmatprep.subr.mxu0 0.0
        %912 = vmatpush1.xpose.msra.mxu0 0.0
        %913 = vmatprep.subr.mxu0 0.0
        %914 = vmatpush1.xpose.msra.mxu0 0.0
        %915 = vmatprep.subr.mxu0 0.0
        %916 = vmatpush1.xpose.msra.mxu0 0.0
        %917 = vmatprep.subr.mxu0 0.0
        %918 = vmatpush1.xpose.msra.mxu0 0.0
        %919 = vmatprep.subr.mxu0 0.0
        %920 = vmatpush1.xpose.msra.mxu0 0.0
        %921 = vmatprep.subr.mxu0 0.0
        %922 = vmatpush1.xpose.msra.mxu0 0.0
        %923 = vmatprep.subr.mxu0 0.0
        %924 = vmatpush1.xpose.msra.mxu0 0.0
        %925 = vmatprep.subr.mxu0 0.0
        %926 = vmatpush1.xpose.msra.mxu0 0.0
        %927 = vmatprep.subr.mxu0 0.0
        %928 = vmatpush1.xpose.msra.mxu0 0.0
        %929 = vmatprep.subr.mxu0 0.0
        %930 = vmatpush1.xpose.msra.mxu0 0.0
        %931 = vmatprep.subr.mxu0 0.0
        %932 = vmatpush1.xpose.msra.mxu0 0.0
        %933 = vmatprep.subr.mxu0 0.0
        %934 = vmatpush1.xpose.msra.mxu0 0.0
        %935 = vmatprep.subr.mxu0 0.0
        %936 = vmatpush1.xpose.msra.mxu0 0.0
        %937 = vmatprep.subr.mxu0 0.0
        %938 = vmatpush1.xpose.msra.mxu0 0.0
        %939 = vmatprep.subr.mxu0 0.0
        %940 = vmatpush1.xpose.msra.mxu0 0.0
        %941 = vmatprep.subr.mxu0 0.0
        %942 = vmatpush1.xpose.msra.mxu0 0.0
        %943 = vmatprep.subr.mxu0 0.0
        %944 = vmatpush1.xpose.msra.mxu0 0.0
        %945 = vmatprep.subr.mxu0 0.0
        %946 = vmatpush1.xpose.msra.mxu0 0.0
        %947 = vmatprep.subr.mxu0 0.0
        %948 = vmatpush1.xpose.msra.mxu0 0.0
        %949 = vmatprep.subr.mxu0 0.0
        %950 = vmatpush1.xpose.msra.mxu0 0.0
        %951 = vmatprep.subr.mxu0 0.0
        %952 = vmatpush1.xpose.msra.mxu0 0.0
        %953 = vmatprep.subr.mxu0 0.0
        %954 = vmatpush1.xpose.msra.mxu0 0.0
        %955 = vmatprep.subr.mxu0 0.0
        %956 = vmatpush1.xpose.msra.mxu0 0.0
        %957 = vmatprep.subr.mxu0 0.0
        %958 = vmatpush1.xpose.msra.mxu0 0.0
        %959 = vmatprep.subr.mxu0 0.0
        %960 = vmatpush1.xpose.msra.mxu0 0.0
        %961 = vmatprep.subr.mxu0 0.0
        %962 = vmatpush1.xpose.msra.mxu0 0.0
        %963 = vmatprep.subr.mxu0 0.0
        %964 = vmatpush1.xpose.msra.mxu0 0.0
        %965 = vmatprep.subr.mxu0 0.0
        %966 = vmatpush1.xpose.msra.mxu0 0.0
        %967 = vmatprep.mubr.f32.mxu0 0.0
        %968 = vmatmul.mubr.f32.gmra.mrb[0].mxu0 %v899
        %v969 = vpop.f32.mrb[0].mxu0
        %v970 = vadd.f32 0.0, %v969
        %v971 = vpop.f32.mrb[0].mxu0
        %972 = vdwg.mxu0
        %v973 = vsel %vm716, %v970, -inf
        %974 = vmax.xlane.f32.xlu0 %v973
        %v975 = vpop.xlane.xlu0 %974
        %v976 = vsub.f32 %v970, %v975
        %v977 = vmul.f32 %v976, 1.442695
        %v978 = vpow.pop %v977
        %v979 = vsel %vm716, %v978, 0.0
        %980 = vadd.xlane.f32.xlu0 %v979
        %v981 = vpop.xlane.xlu0 %980
        %v982 = vrcp.pop %v981
        %v983 = vmul.f32 %v978, %v982
        %v984 = vadd.f32 %v894, %v983
        %985 = vrot.lane.b32.xlu0 %v536, 104
        %v986 = vpop.permute.xlu0 %985
        %987 = vrot.lane.b32.xlu0 %v635, 104
        %v988 = vpop.permute.xlu0 %987
        %v989 = vsel %vm716, %v986, 0
        %v991 = vsel %vm716, %v988, 0
        %993 = vmatprep.subr.mxu0 0.0
        %994 = vmatpush1.xpose.msra.mxu0 %v991
        %995 = vmatprep.subr.mxu0 0.0
        %996 = vmatpush1.xpose.msra.mxu0 0.0
        %997 = vmatprep.subr.mxu0 0.0
        %998 = vmatpush1.xpose.msra.mxu0 0.0
        %999 = vmatprep.subr.mxu0 0.0
        %1000 = vmatpush1.xpose.msra.mxu0 0.0
        %1001 = vmatprep.subr.mxu0 0.0
        %1002 = vmatpush1.xpose.msra.mxu0 0.0
        %1003 = vmatprep.subr.mxu0 0.0
        %1004 = vmatpush1.xpose.msra.mxu0 0.0
        %1005 = vmatprep.subr.mxu0 0.0
        %1006 = vmatpush1.xpose.msra.mxu0 0.0
        %1007 = vmatprep.subr.mxu0 0.0
        %1008 = vmatpush1.xpose.msra.mxu0 0.0
        %1009 = vmatprep.subr.mxu0 0.0
        %1010 = vmatpush1.xpose.msra.mxu0 0.0
        %1011 = vmatprep.subr.mxu0 0.0
        %1012 = vmatpush1.xpose.msra.mxu0 0.0
        %1013 = vmatprep.subr.mxu0 0.0
        %1014 = vmatpush1.xpose.msra.mxu0 0.0
        %1015 = vmatprep.subr.mxu0 0.0
        %1016 = vmatpush1.xpose.msra.mxu0 0.0
        %1017 = vmatprep.subr.mxu0 0.0
        %1018 = vmatpush1.xpose.msra.mxu0 0.0
        %1019 = vmatprep.subr.mxu0 0.0
        %1020 = vmatpush1.xpose.msra.mxu0 0.0
        %1021 = vmatprep.subr.mxu0 0.0
        %1022 = vmatpush1.xpose.msra.mxu0 0.0
        %1023 = vmatprep.subr.mxu0 0.0
        %1024 = vmatpush1.xpose.msra.mxu0 0.0
        %1025 = vmatprep.subr.mxu0 0.0
        %1026 = vmatpush1.xpose.msra.mxu0 0.0
        %1027 = vmatprep.subr.mxu0 0.0
        %1028 = vmatpush1.xpose.msra.mxu0 0.0
        %1029 = vmatprep.subr.mxu0 0.0
        %1030 = vmatpush1.xpose.msra.mxu0 0.0
        %1031 = vmatprep.subr.mxu0 0.0
        %1032 = vmatpush1.xpose.msra.mxu0 0.0
        %1033 = vmatprep.subr.mxu0 0.0
        %1034 = vmatpush1.xpose.msra.mxu0 0.0
        %1035 = vmatprep.subr.mxu0 0.0
        %1036 = vmatpush1.xpose.msra.mxu0 0.0
        %1037 = vmatprep.subr.mxu0 0.0
        %1038 = vmatpush1.xpose.msra.mxu0 0.0
        %1039 = vmatprep.subr.mxu0 0.0
        %1040 = vmatpush1.xpose.msra.mxu0 0.0
        %1041 = vmatprep.subr.mxu0 0.0
        %1042 = vmatpush1.xpose.msra.mxu0 0.0
        %1043 = vmatprep.subr.mxu0 0.0
        %1044 = vmatpush1.xpose.msra.mxu0 0.0
        %1045 = vmatprep.subr.mxu0 0.0
        %1046 = vmatpush1.xpose.msra.mxu0 0.0
        %1047 = vmatprep.subr.mxu0 0.0
        %1048 = vmatpush1.xpose.msra.mxu0 0.0
        %1049 = vmatprep.subr.mxu0 0.0
        %1050 = vmatpush1.xpose.msra.mxu0 0.0
        %1051 = vmatprep.subr.mxu0 0.0
        %1052 = vmatpush1.xpose.msra.mxu0 0.0
        %1053 = vmatprep.subr.mxu0 0.0
        %1054 = vmatpush1.xpose.msra.mxu0 0.0
        %1055 = vmatprep.subr.mxu0 0.0
        %1056 = vmatpush1.xpose.msra.mxu0 0.0
        %1057 = vmatprep.mubr.f32.mxu0 0.0
        %1058 = vmatmul.mubr.f32.gmra.mrb[0].mxu0 %v989
        %v1059 = vpop.f32.mrb[0].mxu0
        %v1060 = vadd.f32 0.0, %v1059
        %v1061 = vpop.f32.mrb[0].mxu0
        %1062 = vdwg.mxu0
        %v1063 = vsel %vm716, %v1060, -inf
        %1064 = vmax.xlane.f32.xlu0 %v1063
        %v1065 = vpop.xlane.xlu0 %1064
        %v1066 = vsub.f32 %v1060, %v1065
        %v1067 = vmul.f32 %v1066, 1.442695
        %v1068 = vpow.pop %v1067
        %v1069 = vsel %vm716, %v1068, 0.0
        %1070 = vadd.xlane.f32.xlu0 %v1069
        %v1071 = vpop.xlane.xlu0 %1070
        %v1072 = vrcp.pop %v1071
        %v1073 = vmul.f32 %v1068, %v1072
        %v1074 = vadd.f32 %v984, %v1073
        %v1076 = vsel %vm716, %v1074, 0
        %1078 = vmatprep.subr.mxu0 0.0
        %1079 = vmatpush1.msra.mxu0 %v713
        %1080 = vmatprep.subr.mxu0 0.0
        %1081 = vmatpush1.msra.mxu0 0.0
        %1082 = vmatprep.subr.mxu0 0.0
        %1083 = vmatpush1.msra.mxu0 0.0
        %1084 = vmatprep.subr.mxu0 0.0
        %1085 = vmatpush1.msra.mxu0 0.0
        %1086 = vmatprep.subr.mxu0 0.0
        %1087 = vmatpush1.msra.mxu0 0.0
        %1088 = vmatprep.subr.mxu0 0.0
        %1089 = vmatpush1.msra.mxu0 0.0
        %1090 = vmatprep.subr.mxu0 0.0
        %1091 = vmatpush1.msra.mxu0 0.0
        %1092 = vmatprep.subr.mxu0 0.0
        %1093 = vmatpush1.msra.mxu0 0.0
        %1094 = vmatprep.subr.mxu0 0.0
        %1095 = vmatpush1.msra.mxu0 0.0
        %1096 = vmatprep.subr.mxu0 0.0
        %1097 = vmatpush1.msra.mxu0 0.0
        %1098 = vmatprep.subr.mxu0 0.0
        %1099 = vmatpush1.msra.mxu0 0.0
        %1100 = vmatprep.subr.mxu0 0.0
        %1101 = vmatpush1.msra.mxu0 0.0
        %1102 = vmatprep.subr.mxu0 0.0
        %1103 = vmatpush1.msra.mxu0 0.0
        %1104 = vmatprep.subr.mxu0 0.0
        %1105 = vmatpush1.msra.mxu0 0.0
        %1106 = vmatprep.subr.mxu0 0.0
        %1107 = vmatpush1.msra.mxu0 0.0
        %1108 = vmatprep.subr.mxu0 0.0
        %1109 = vmatpush1.msra.mxu0 0.0
        %1110 = vmatprep.subr.mxu0 0.0
        %1111 = vmatpush1.msra.mxu0 0.0
        %1112 = vmatprep.subr.mxu0 0.0
        %1113 = vmatpush1.msra.mxu0 0.0
        %1114 = vmatprep.subr.mxu0 0.0
        %1115 = vmatpush1.msra.mxu0 0.0
        %1116 = vmatprep.subr.mxu0 0.0
        %1117 = vmatpush1.msra.mxu0 0.0
        %1118 = vmatprep.subr.mxu0 0.0
        %1119 = vmatpush1.msra.mxu0 0.0
        %1120 = vmatprep.subr.mxu0 0.0
        %1121 = vmatpush1.msra.mxu0 0.0
        %1122 = vmatprep.subr.mxu0 0.0
        %1123 = vmatpush1.msra.mxu0 0.0
        %1124 = vmatprep.subr.mxu0 0.0
        %1125 = vmatpush1.msra.mxu0 0.0
        %1126 = vmatprep.subr.mxu0 0.0
        %1127 = vmatpush1.msra.mxu0 0.0
        %1128 = vmatprep.subr.mxu0 0.0
        %1129 = vmatpush1.msra.mxu0 0.0
        %1130 = vmatprep.subr.mxu0 0.0
        %1131 = vmatpush1.msra.mxu0 0.0
        %1132 = vmatprep.subr.mxu0 0.0
        %1133 = vmatpush1.msra.mxu0 0.0
        %1134 = vmatprep.subr.mxu0 0.0
        %1135 = vmatpush1.msra.mxu0 0.0
        %1136 = vmatprep.subr.mxu0 0.0
        %1137 = vmatpush1.msra.mxu0 0.0
        %1138 = vmatprep.subr.mxu0 0.0
        %1139 = vmatpush1.msra.mxu0 0.0
        %1140 = vmatprep.subr.mxu0 0.0
        %1141 = vmatpush1.msra.mxu0 0.0
        %1142 = vmatprep.mubr.f32.mxu0 0.0
        %1143 = vmatmul.mubr.f32.gmra.mrb[0].mxu0 %v1076
        %v1144 = vpop.f32.mrb[0].mxu0
        %v1145 = vadd.f32 0.0, %v1144
        %v1146 = vpop.f32.mrb[0].mxu0
        %1147 = vdwg.mxu0
        %1148 = vst.msk [vmem:[%s353] sm:$0xff] %vm409, %v1145
        %1150 = vrot.lane.b32.xlu0 %v893, 8
        %v1151 = vpop.permute.xlu0 %1150
        %1154 = vrot.lane.b32.xlu0 %v983, 16
        %v1155 = vpop.permute.xlu0 %1154
        %1158 = vrot.lane.b32.xlu0 %v1073, 24
        %v1159 = vpop.permute.xlu0 %1158
        %v1161 = vsel %vm716, %v803, %v1151
        %vm1162 = vcmask 130048
        %v1163 = vsel %vm1162, %v1161, %v1155
        %vm1164 = vcmask 195584
        %v1165 = vsel %vm1164, %v1163, %v1159
        %1166 = vst.msk [vmem:[%s360] sm:$0xff] %vm409, %v1165
        %s1167 = sand.u32 %s218, 1
        %s1168 = scalar_lea.sflag [#allocation3], %s1167
        %s1169 = sand.u32 %s218, 1
        %s1170 = smul.addr %s1169, 8
        %s1171 = scalar_lea.vmem [#allocation2], %s1170
        %s1172 = sand.u32 %s244, 1
        %s1173 = scalar_lea.sflag [#allocation5], %s1172
        %s1174 = sand.u32 %s244, 1
        %s1175 = smul.addr %s1174, 8
        %s1176 = scalar_lea.vmem [#allocation4], %s1175
        // Predicated region
        $region53: #{tpu_custom_call.1} parent=51 // pred_check
          %p1177 = pneg %p228
        $region54: #{tpu_custom_call.1} parent=51 // pred_check_branch
          %1179 = sbr.rel (%p1177) target = $region56
        $region55: #{tpu_custom_call.1} parent=51 // pred_region
          %s1181 = ssub.s32 128, 128
          %1182 = vsyncadd %s1168, %s1181
          %s1183 = smul.addr %s27, 128
          %s1184 = scalar_lea.hbm %s8, %s1183
          %s1186 = sshll.u32 %s1171, 4
          %s1187 = int_to_ptr.vmem [resolvable:$true] %s1186
          %1189 = dma.vmem_to_hbm [thread:$0]  %s1187, 128, %s1184, %s1168
        $region56: #{tpu_custom_call.1} parent=51 // pred_fallthru
          _
        // Predicated region
        $region57: #{tpu_custom_call.1} parent=51 // pred_check
          %p1190 = pneg %p254
        $region58: #{tpu_custom_call.1} parent=51 // pred_check_branch
          %1192 = sbr.rel (%p1190) target = $region60
        $region59: #{tpu_custom_call.1} parent=51 // pred_region
          %s1194 = ssub.s32 128, 128
          %1195 = vsyncadd %s1173, %s1194
          %s1196 = smul.addr %s27, 128
          %s1197 = scalar_lea.hbm %s9, %s1196
          %s1199 = sshll.u32 %s1176, 4
          %s1200 = int_to_ptr.vmem [resolvable:$true] %s1199
          %1202 = dma.vmem_to_hbm [thread:$0]  %s1200, 128, %s1197, %s1173
        $region60: #{tpu_custom_call.1} parent=51 // pred_fallthru
          _
      $region52: #{tpu_custom_call.1} parent=5 // pred_fallthru
        _
      %p1203 = scmp.le.s32.totalorder 2, %s22
      // Predicated region
      $region61: #{tpu_custom_call.1} parent=5 // pred_check
        %p1204 = pneg %p1203
      $region62: #{tpu_custom_call.1} parent=5 // pred_check_branch
        %1206 = sbr.rel (%p1204) target = $region64
      $region63: #{tpu_custom_call.1} parent=5 // pred_region
        %s1207 = ssub.s32 %s22, 2
        // Predicated region
        $region65: #{tpu_custom_call.1} parent=63 // pred_check
          %p1208 = pneg %p234
        $region66: #{tpu_custom_call.1} parent=63 // pred_check_branch
          %1210 = sbr.rel (%p1208) target = $region68
        $region67: #{tpu_custom_call.1} parent=63 // pred_region
          %s1211 = sand.u32 %s219, 1
          %s1212 = scalar_lea.sflag [#allocation3], %s1211
          %s1213 = sand.u32 %s219, 1
          %s1214 = smul.addr %s1213, 8
          %s1215 = scalar_lea.vmem [#allocation2], %s1214
          %1216 = dma.done %s1212, 128
        $region68: #{tpu_custom_call.1} parent=63 // pred_fallthru
          _
        // Predicated region
        $region69: #{tpu_custom_call.1} parent=63 // pred_check
          %p1217 = pneg %p260
        $region70: #{tpu_custom_call.1} parent=63 // pred_check_branch
          %1219 = sbr.rel (%p1217) target = $region72
        $region71: #{tpu_custom_call.1} parent=63 // pred_region
          %s1220 = sand.u32 %s245, 1
          %s1221 = scalar_lea.sflag [#allocation5], %s1220
          %s1222 = sand.u32 %s245, 1
          %s1223 = smul.addr %s1222, 8
          %s1224 = scalar_lea.vmem [#allocation4], %s1223
          %1225 = dma.done %s1221, 128
        $region72: #{tpu_custom_call.1} parent=63 // pred_fallthru
          _
      $region64: #{tpu_custom_call.1} parent=5 // pred_fallthru
        _
    $region6: #{tpu_custom_call.1} parent=1 // loop_footer
      %s26 = sadd.s32 1, %s22
    $region7: #{tpu_custom_call.1} parent=1 // loop_footer_branch
      %21 = sbr.rel target = $region3
    $region8: #{tpu_custom_call.1} parent=1 // loop_exit
      _
    %1226 = vsyncpa [#allocation3], 1
    %s1227 = scalar_lea.sflag [#allocation3], 1
    %1228 = vsyncpa %s1227, 1
    %1229 = vsyncpa [#allocation5], 1
    %s1230 = scalar_lea.sflag [#allocation5], 1
    %1231 = vsyncpa %s1230, 1

</llo_original>
